<compile_context>
chip_gen: v6e
topology: v6e:2x2x1
jax: 0.10.0
libtpu: 0.0.40
codegen_flags: <defaults>
</compile_context>

<pallas_src>
import jax
import jax.numpy as jnp
from jax.experimental import pallas as pl
from jax.experimental.pallas import tpu as pltpu

LATENT = 20      # latent dim of the VAE
HEAD_N = 128     # fused (mu | logvar) head padded to one full lane group


def _round_up(n, m):
    return ((n + m - 1) // m) * m


def vae_kernel(x_ref, eps_ref,
               w1_ref, b1_ref,
               wh_ref, bh_ref,      # fused + lane-padded (mu|logvar) head
               w3_ref, b3_ref,
               w4_ref, b4_ref,
               recon_ref, ml_ref):
    x = x_ref[...].astype(jnp.bfloat16)      # [TM, 784] bf16 (no-op if already bf16)
    eps = eps_ref[...]                       # [TM, 20]  f32

    # ---- encode: fc1 + relu ----
    h1 = jnp.dot(x, w1_ref[...], preferred_element_type=jnp.float32) + b1_ref[...]
    h1 = jnp.maximum(h1, 0.0)                # [TM, 400] f32

    # ---- fused mu|logvar head (single MXU pass, lane-dense [TM,128] output) ----
    ml = jnp.dot(h1.astype(jnp.bfloat16), wh_ref[...],
                 preferred_element_type=jnp.float32) + bh_ref[...]   # [TM, 128]
    mu = ml[:, :LATENT]                      # [TM, 20]
    logvar = ml[:, LATENT:2 * LATENT]        # [TM, 20]

    # ---- reparametrization ----
    std = jnp.exp(0.5 * logvar)
    z = eps * std + mu                       # [TM, 20] f32

    # ---- decode: fc3 + relu, fc4 + sigmoid ----
    h3 = jnp.dot(z.astype(jnp.bfloat16), w3_ref[...],
                 preferred_element_type=jnp.float32) + b3_ref[...]
    h3 = jnp.maximum(h3, 0.0)                # [TM, 400] f32

    logits = jnp.dot(h3.astype(jnp.bfloat16), w4_ref[...],
                     preferred_element_type=jnp.float32) + b4_ref[...]

    recon_ref[...] = jax.nn.sigmoid(logits).astype(recon_ref.dtype)  # [TM, 784] bf16
    ml_ref[...] = ml                                                 # [TM, 128] f32


def prepare_params(params):
    """Host-side, call ONCE (outside the jitted forward): fuse the two encoder
    heads, pad them to 128 output lanes, cast matmul weights to bf16."""
    (w1, b1, w2m, b2m, w2v, b2v, w3, b3, w4, b4) = params

    wh = jnp.zeros((w2m.shape[0], HEAD_N), jnp.float32)
    wh = wh.at[:, :LATENT].set(w2m).at[:, LATENT:2 * LATENT].set(w2v)
    bh = jnp.zeros((1, HEAD_N), jnp.float32)
    bh = bh.at[:, :LATENT].set(b2m).at[:, LATENT:2 * LATENT].set(b2v)

    bf16 = jnp.bfloat16
    return (w1.astype(bf16), b1,
            wh.astype(bf16), bh,
            w3.astype(bf16), b3,
            w4.astype(bf16), b4)


@jax.jit
def vae_forward(x, eps, prepared):
    """x: [B, 784] (ideally bf16), eps: [B, 20] f32 standard-normal noise,
    prepared: output of prepare_params (called once, not per forward).

    Returns (recon [B, 784] bf16, mu [B, 20] f32, logvar [B, 20] f32)."""
    (w1, b1, wh, bh, w3, b3, w4, b4) = prepared
    B, D_IN = x.shape

    # Batch tile: full (8-padded) batch when small; up to 512-row tiles when
    # large (best measured HBM-roofline fraction), but always >= 2 grid steps
    # for B > 128 so both v7x TensorCores get work under "parallel".
    if B <= 128:
        TM = _round_up(max(B, 8), 8)
    else:
        TM = 512
        while TM > 128 and (B + TM - 1) // TM < 2:
            TM //= 2
    Bp = _round_up(B, TM)
    if Bp != B:
        x = jnp.pad(x, ((0, Bp - B), (0, 0)))
        eps = jnp.pad(eps, ((0, Bp - B), (0, 0)))

    grid = (Bp // TM,)

    # Weights/biases: full-array blocks with a constant index_map -> resident
    # in VMEM, not re-DMA'd across batch tiles.
    def resident(shape):
        return pl.BlockSpec(shape, lambda i: (0, 0))

    in_specs = [
        pl.BlockSpec((TM, D_IN), lambda i: (i, 0)),    # x
        pl.BlockSpec((TM, LATENT), lambda i: (i, 0)),  # eps
        resident(w1.shape), resident(b1.shape),
        resident(wh.shape), resident(bh.shape),
        resident(w3.shape), resident(b3.shape),
        resident(w4.shape), resident(b4.shape),
    ]
    out_specs = (
        pl.BlockSpec((TM, D_IN), lambda i: (i, 0)),    # recon (bf16)
        pl.BlockSpec((TM, HEAD_N), lambda i: (i, 0)),  # mu|logvar slab (f32)
    )

    recon_p, ml = pl.pallas_call(
        vae_kernel,
        grid=grid,
        out_shape=(
            jax.ShapeDtypeStruct((Bp, D_IN), jnp.bfloat16),
            jax.ShapeDtypeStruct((Bp, HEAD_N), jnp.float32),
        ),
        in_specs=in_specs,
        out_specs=out_specs,
        compiler_params=pltpu.CompilerParams(
            dimension_semantics=("parallel",),
            vmem_limit_bytes=32 << 20,
        ),
    )(x, eps, w1, b1, wh, bh, w3, b3, w4, b4)

    recon = recon_p[:B]
    mu = ml[:B, :LATENT]
    logvar = ml[:B, LATENT:2 * LATENT]
    return recon, mu, logvar


def init_linear(key, fan_in, fan_out):
    """Deterministic init mimicking nn.Linear default (uniform +-1/sqrt(fan_in)).
    Weight returned as [in, out] so the kernel does x @ W."""
    kw, kb = jax.random.split(key)
    bound = 1.0 / jnp.sqrt(fan_in)
    w = jax.random.uniform(kw, (fan_in, fan_out), jnp.float32, -bound, bound)
    b = jax.random.uniform(kb, (1, fan_out), jnp.float32, -bound, bound)
    return w, b


if __name__ == "__main__":
    root = jax.random.PRNGKey(0)
    k_x, k_eps, k1, k2, k3, k4, k5 = jax.random.split(root, 7)

    B = 8  # small batch

    # Deterministic synthetic "MNIST" batch: values in [0, 1], flattened 28*28.
    # Cast to bf16 at the producer (not inside the forward) per the review.
    x = jax.random.uniform(k_x, (B, 784), jnp.float32, 0.0, 1.0)
    x_bf16 = x.astype(jnp.bfloat16)
    # Standard-normal noise for the reparametrization trick (torch.randn equiv).
    eps = jax.random.normal(k_eps, (B, LATENT), jnp.float32)

    w1, b1 = init_linear(k1, 784, 400)     # fc1
    w2m, b2m = init_linear(k2, 400, 20)    # fc2_mean
    w2v, b2v = init_linear(k3, 400, 20)    # fc2_logvar
    w3, b3 = init_linear(k4, 20, 400)      # fc3
    w4, b4 = init_linear(k5, 400, 784)     # fc4
    params = (w1, b1, w2m, b2m, w2v, b2v, w3, b3, w4, b4)

    # Pack / pad / cast weights exactly once, outside the jitted forward.
    prepared = prepare_params(params)
    jax.block_until_ready(prepared)

    recon, mu, logvar = vae_forward(x_bf16, eps, prepared)
    jax.block_until_ready((recon, mu, logvar))

    # Pure-JAX reference with the SAME bf16 input/weight precision as the
    # kernel (f32 accumulation), so the check is tight.
    bf16, f32 = jnp.bfloat16, jnp.float32
    h1 = jax.nn.relu(jnp.dot(x_bf16, w1.astype(bf16),
                             preferred_element_type=f32) + b1)
    mu_ref = jnp.dot(h1.astype(bf16), w2m.astype(bf16),
                     preferred_element_type=f32) + b2m
    lv_ref = jnp.dot(h1.astype(bf16), w2v.astype(bf16),
                     preferred_element_type=f32) + b2v
    z_ref = eps * jnp.exp(0.5 * lv_ref) + mu_ref
    h3 = jax.nn.relu(jnp.dot(z_ref.astype(bf16), w3.astype(bf16),
                             preferred_element_type=f32) + b3)
    recon_ref = jax.nn.sigmoid(jnp.dot(h3.astype(bf16), w4.astype(bf16),
                                       preferred_element_type=f32) + b4)

    assert recon.shape == (B, 784) and recon.dtype == jnp.bfloat16
    assert mu.shape == (B, LATENT) and logvar.shape == (B, LATENT)
    assert jnp.allclose(mu, mu_ref, atol=2e-3, rtol=2e-3)
    assert jnp.allclose(logvar, lv_ref, atol=2e-3, rtol=2e-3)
    assert jnp.allclose(recon.astype(f32), recon_ref, atol=1e-2, rtol=1e-2)

    print("KERNEL_OK")
</pallas_src>

<mosaic_0001>
module attributes {stable_mosaic.version = 11 : i64} {
  func.func @vae_kernel(%arg0: i32, %arg1: memref<8x784xbf16, #tpu.memory_space<vmem>>, %arg2: memref<8x20xf32, #tpu.memory_space<vmem>>, %arg3: memref<784x400xbf16, #tpu.memory_space<vmem>>, %arg4: memref<1x400xf32, #tpu.memory_space<vmem>>, %arg5: memref<400x128xbf16, #tpu.memory_space<vmem>>, %arg6: memref<1x128xf32, #tpu.memory_space<vmem>>, %arg7: memref<20x400xbf16, #tpu.memory_space<vmem>>, %arg8: memref<1x400xf32, #tpu.memory_space<vmem>>, %arg9: memref<400x784xbf16, #tpu.memory_space<vmem>>, %arg10: memref<1x784xf32, #tpu.memory_space<vmem>>, %arg11: memref<8x784xbf16, #tpu.memory_space<vmem>>, %arg12: memref<8x128xf32, #tpu.memory_space<vmem>>) attributes {dimension_semantics = [#tpu.dimension_semantics<parallel>], iteration_bounds = array<i64: 1>, scalar_prefetch = 0 : i64, scratch_operands = 0 : i64, tpu.core_type = #tpu.core_type<tc>, window_params = [{transform_indices = @transform_0, window_bounds = array<i64: 8, 784>}, {transform_indices = @transform_1, window_bounds = array<i64: 8, 20>}, {pipeline_mode = #tpu.pipeline_mode<synchronous>, transform_indices = @transform_2, window_bounds = array<i64: 784, 400>}, {pipeline_mode = #tpu.pipeline_mode<synchronous>, transform_indices = @transform_3, window_bounds = array<i64: 1, 400>}, {pipeline_mode = #tpu.pipeline_mode<synchronous>, transform_indices = @transform_4, window_bounds = array<i64: 400, 128>}, {pipeline_mode = #tpu.pipeline_mode<synchronous>, transform_indices = @transform_5, window_bounds = array<i64: 1, 128>}, {pipeline_mode = #tpu.pipeline_mode<synchronous>, transform_indices = @transform_6, window_bounds = array<i64: 20, 400>}, {pipeline_mode = #tpu.pipeline_mode<synchronous>, transform_indices = @transform_7, window_bounds = array<i64: 1, 400>}, {pipeline_mode = #tpu.pipeline_mode<synchronous>, transform_indices = @transform_8, window_bounds = array<i64: 400, 784>}, {pipeline_mode = #tpu.pipeline_mode<synchronous>, transform_indices = @transform_9, window_bounds = array<i64: 1, 784>}, {transform_indices = @transform_10, window_bounds = array<i64: 8, 784>}, {transform_indices = @transform_11, window_bounds = array<i64: 8, 128>}]} {
    %c0 = arith.constant 0 : index
    %c0_0 = arith.constant 0 : index
    %0 = vector.load %arg1[%c0, %c0_0] : memref<8x784xbf16, #tpu.memory_space<vmem>>, vector<8x784xbf16>
    %c0_1 = arith.constant 0 : index
    %c0_2 = arith.constant 0 : index
    %1 = vector.load %arg2[%c0_1, %c0_2] : memref<8x20xf32, #tpu.memory_space<vmem>>, vector<8x20xf32>
    %c0_3 = arith.constant 0 : index
    %c0_4 = arith.constant 0 : index
    %2 = vector.load %arg3[%c0_3, %c0_4] : memref<784x400xbf16, #tpu.memory_space<vmem>>, vector<784x400xbf16>
    %cst = arith.constant dense<0.000000e+00> : vector<8x400xf32>
    %3 = tpu.matmul %0, %2, %cst {dimension_numbers = #tpu.dot_dimension_numbers<[1], [0], [0], [1], [0, 0, 1, 1], [], []>} : vector<8x784xbf16>, vector<784x400xbf16>, vector<8x400xf32> -> vector<8x400xf32>
    %c0_5 = arith.constant 0 : index
    %c0_6 = arith.constant 0 : index
    %4 = vector.load %arg4[%c0_5, %c0_6] : memref<1x400xf32, #tpu.memory_space<vmem>>, vector<1x400xf32>
    %5 = vector.broadcast %4 : vector<1x400xf32> to vector<8x400xf32>
    %6 = arith.addf %3, %5 : vector<8x400xf32>
    %cst_7 = arith.constant 0.000000e+00 : f32
    %7 = vector.broadcast %cst_7 : f32 to vector<8x400xf32>
    %8 = arith.maximumf %6, %7 : vector<8x400xf32>
    %9 = arith.truncf %8 : vector<8x400xf32> to vector<8x400xbf16>
    %c0_8 = arith.constant 0 : index
    %c0_9 = arith.constant 0 : index
    %10 = vector.load %arg5[%c0_8, %c0_9] : memref<400x128xbf16, #tpu.memory_space<vmem>>, vector<400x128xbf16>
    %cst_10 = arith.constant dense<0.000000e+00> : vector<8x128xf32>
    %11 = tpu.matmul %9, %10, %cst_10 {dimension_numbers = #tpu.dot_dimension_numbers<[1], [0], [0], [1], [0, 0, 1, 1], [], []>} : vector<8x400xbf16>, vector<400x128xbf16>, vector<8x128xf32> -> vector<8x128xf32>
    %c0_11 = arith.constant 0 : index
    %c0_12 = arith.constant 0 : index
    %12 = vector.load %arg6[%c0_11, %c0_12] : memref<1x128xf32, #tpu.memory_space<vmem>>, vector<1x128xf32>
    %13 = vector.broadcast %12 : vector<1x128xf32> to vector<8x128xf32>
    %14 = arith.addf %11, %13 : vector<8x128xf32>
    %15 = vector.extract_strided_slice %14 {offsets = [0, 0], sizes = [8, 20], strides = [1, 1]} : vector<8x128xf32> to vector<8x20xf32>
    %16 = vector.extract_strided_slice %14 {offsets = [0, 20], sizes = [8, 20], strides = [1, 1]} : vector<8x128xf32> to vector<8x20xf32>
    %cst_13 = arith.constant 5.000000e-01 : f32
    %17 = vector.broadcast %cst_13 : f32 to vector<8x20xf32>
    %18 = arith.mulf %17, %16 : vector<8x20xf32>
    %19 = math.exp %18 : vector<8x20xf32>
    %20 = arith.mulf %1, %19 : vector<8x20xf32>
    %21 = arith.addf %20, %15 : vector<8x20xf32>
    %22 = arith.truncf %21 : vector<8x20xf32> to vector<8x20xbf16>
    %c0_14 = arith.constant 0 : index
    %c0_15 = arith.constant 0 : index
    %23 = vector.load %arg7[%c0_14, %c0_15] : memref<20x400xbf16, #tpu.memory_space<vmem>>, vector<20x400xbf16>
    %cst_16 = arith.constant dense<0.000000e+00> : vector<8x400xf32>
    %24 = tpu.matmul %22, %23, %cst_16 {dimension_numbers = #tpu.dot_dimension_numbers<[1], [0], [0], [1], [0, 0, 1, 1], [], []>} : vector<8x20xbf16>, vector<20x400xbf16>, vector<8x400xf32> -> vector<8x400xf32>
    %c0_17 = arith.constant 0 : index
    %c0_18 = arith.constant 0 : index
    %25 = vector.load %arg8[%c0_17, %c0_18] : memref<1x400xf32, #tpu.memory_space<vmem>>, vector<1x400xf32>
    %26 = vector.broadcast %25 : vector<1x400xf32> to vector<8x400xf32>
    %27 = arith.addf %24, %26 : vector<8x400xf32>
    %cst_19 = arith.constant 0.000000e+00 : f32
    %28 = vector.broadcast %cst_19 : f32 to vector<8x400xf32>
    %29 = arith.maximumf %27, %28 : vector<8x400xf32>
    %30 = arith.truncf %29 : vector<8x400xf32> to vector<8x400xbf16>
    %c0_20 = arith.constant 0 : index
    %c0_21 = arith.constant 0 : index
    %31 = vector.load %arg9[%c0_20, %c0_21] : memref<400x784xbf16, #tpu.memory_space<vmem>>, vector<400x784xbf16>
    %cst_22 = arith.constant dense<0.000000e+00> : vector<8x784xf32>
    %32 = tpu.matmul %30, %31, %cst_22 {dimension_numbers = #tpu.dot_dimension_numbers<[1], [0], [0], [1], [0, 0, 1, 1], [], []>} : vector<8x400xbf16>, vector<400x784xbf16>, vector<8x784xf32> -> vector<8x784xf32>
    %c0_23 = arith.constant 0 : index
    %c0_24 = arith.constant 0 : index
    %33 = vector.load %arg10[%c0_23, %c0_24] : memref<1x784xf32, #tpu.memory_space<vmem>>, vector<1x784xf32>
    %34 = vector.broadcast %33 : vector<1x784xf32> to vector<8x784xf32>
    %35 = arith.addf %32, %34 : vector<8x784xf32>
    %36 = arith.negf %35 : vector<8x784xf32>
    %37 = math.exp %36 : vector<8x784xf32>
    %cst_25 = arith.constant 1.000000e+00 : f32
    %38 = vector.broadcast %cst_25 : f32 to vector<8x784xf32>
    %39 = arith.addf %38, %37 : vector<8x784xf32>
    %40 = arith.divf %38, %39 : vector<8x784xf32>
    %41 = arith.truncf %40 : vector<8x784xf32> to vector<8x784xbf16>
    %c0_26 = arith.constant 0 : index
    %c0_27 = arith.constant 0 : index
    %42 = vector.load %arg11[%c0_26, %c0_27] : memref<8x784xbf16, #tpu.memory_space<vmem>>, vector<8x784xbf16>
    tpu.vector_store %arg11[%c0_26, %c0_27], %41 {strides = array<i32>} : memref<8x784xbf16, #tpu.memory_space<vmem>>, vector<8x784xbf16>,
    %c0_28 = arith.constant 0 : index
    %c0_29 = arith.constant 0 : index
    %43 = vector.load %arg12[%c0_28, %c0_29] : memref<8x128xf32, #tpu.memory_space<vmem>>, vector<8x128xf32>
    tpu.vector_store %arg12[%c0_28, %c0_29], %14 {strides = array<i32>} : memref<8x128xf32, #tpu.memory_space<vmem>>, vector<8x128xf32>,
    return
  }
  func.func @transform_0(%arg0: i32) -> (i32, i32) {
    %c0_i32 = arith.constant 0 : i32
    %c0_i32_0 = arith.constant 0 : i32
    return %arg0, %c0_i32 : i32, i32
  }
  func.func @transform_1(%arg0: i32) -> (i32, i32) {
    %c0_i32 = arith.constant 0 : i32
    %c0_i32_0 = arith.constant 0 : i32
    return %arg0, %c0_i32 : i32, i32
  }
  func.func @transform_2(%arg0: i32) -> (i32, i32) {
    %c0_i32 = arith.constant 0 : i32
    %c0_i32_0 = arith.constant 0 : i32
    %c0_i32_1 = arith.constant 0 : i32
    return %c0_i32, %c0_i32_0 : i32, i32
  }
  func.func @transform_3(%arg0: i32) -> (i32, i32) {
    %c0_i32 = arith.constant 0 : i32
    %c0_i32_0 = arith.constant 0 : i32
    %c0_i32_1 = arith.constant 0 : i32
    return %c0_i32, %c0_i32_0 : i32, i32
  }
  func.func @transform_4(%arg0: i32) -> (i32, i32) {
    %c0_i32 = arith.constant 0 : i32
    %c0_i32_0 = arith.constant 0 : i32
    %c0_i32_1 = arith.constant 0 : i32
    return %c0_i32, %c0_i32_0 : i32, i32
  }
  func.func @transform_5(%arg0: i32) -> (i32, i32) {
    %c0_i32 = arith.constant 0 : i32
    %c0_i32_0 = arith.constant 0 : i32
    %c0_i32_1 = arith.constant 0 : i32
    return %c0_i32, %c0_i32_0 : i32, i32
  }
  func.func @transform_6(%arg0: i32) -> (i32, i32) {
    %c0_i32 = arith.constant 0 : i32
    %c0_i32_0 = arith.constant 0 : i32
    %c0_i32_1 = arith.constant 0 : i32
    return %c0_i32, %c0_i32_0 : i32, i32
  }
  func.func @transform_7(%arg0: i32) -> (i32, i32) {
    %c0_i32 = arith.constant 0 : i32
    %c0_i32_0 = arith.constant 0 : i32
    %c0_i32_1 = arith.constant 0 : i32
    return %c0_i32, %c0_i32_0 : i32, i32
  }
  func.func @transform_8(%arg0: i32) -> (i32, i32) {
    %c0_i32 = arith.constant 0 : i32
    %c0_i32_0 = arith.constant 0 : i32
    %c0_i32_1 = arith.constant 0 : i32
    return %c0_i32, %c0_i32_0 : i32, i32
  }
  func.func @transform_9(%arg0: i32) -> (i32, i32) {
    %c0_i32 = arith.constant 0 : i32
    %c0_i32_0 = arith.constant 0 : i32
    %c0_i32_1 = arith.constant 0 : i32
    return %c0_i32, %c0_i32_0 : i32, i32
  }
  func.func @transform_10(%arg0: i32) -> (i32, i32) {
    %c0_i32 = arith.constant 0 : i32
    %c0_i32_0 = arith.constant 0 : i32
    return %arg0, %c0_i32 : i32, i32
  }
  func.func @transform_11(%arg0: i32) -> (i32, i32) {
    %c0_i32 = arith.constant 0 : i32
    %c0_i32_0 = arith.constant 0 : i32
    return %arg0, %c0_i32 : i32, i32
  }
}

</mosaic_0001>

<llo_original>
// kernel: vae_forward.1
$region0: #{vae_forward.1}
  #allocation0 [shape = 'u32[]', space=smem, size = 0x4, offset = 0x4, fixed_abs, tag = 'smem constant byte address 0x4 - core index']
  #allocation1 [shape = 'u32[144,128]{1,0:T(1,128)}', space=vmem, size = 0x12000, scoped, tag = 'internal scratch']
  %s0 = inlined_call_operand.vmem [shape: bf16[8,784], index: 0, kind: input, shape index: {}]
  %s1 = inlined_call_operand.vmem [shape: f32[8,20], index: 1, kind: input, shape index: {}]
  %s2 = inlined_call_operand.vmem [shape: bf16[784,400], index: 2, kind: input, shape index: {}]
  %s3 = inlined_call_operand.vmem [shape: f32[1,400], index: 3, kind: input, shape index: {}]
  %s4 = inlined_call_operand.vmem [shape: bf16[400,128], index: 4, kind: input, shape index: {}]
  %s5 = inlined_call_operand.vmem [shape: f32[1,128], index: 5, kind: input, shape index: {}]
  %s6 = inlined_call_operand.vmem [shape: bf16[20,400], index: 6, kind: input, shape index: {}]
  %s7 = inlined_call_operand.vmem [shape: f32[1,400], index: 7, kind: input, shape index: {}]
  %s8 = inlined_call_operand.vmem [shape: bf16[400,784], index: 8, kind: input, shape index: {}]
  %s9 = inlined_call_operand.vmem [shape: f32[1,784], index: 9, kind: input, shape index: {}]
  %s10 = inlined_call_operand.hbm [shape: bf16[8,784], index: 10, kind: output, shape index: {0}]
  %s11 = inlined_call_operand.vmem [shape: f32[8,128], index: 11, kind: output, shape index: {1}]
  %12 = xla_tuple %s10, %s11
  %s13 = sld [smem:[#allocation0]]
  $region58: #{vae_forward.1} parent=0
    _
  %s15 = ssub.s32 1, %s13
  %s16 = scalar_select 0, %s15, %s13
  $region1: #{vae_forward.1} parent=0
    #allocation2 [shape = 'u8[14336]{0}', space=vmem, size = 0x3800, scoped, tag = 'output window, operand 0, single buffered']
    #allocation3 [shape = 's32[1]{0}', space=sflag, size = 0x4, scoped, tag = 'scoped memory for vae_forward.1']
    %17 = vsyncpa [#allocation3], 0
    // Predicated region
    $region2: #{vae_forward.1} parent=1 // pred_check
      _
    $region3: #{vae_forward.1} parent=1 // pred_check_branch
      %19 = sbr.rel (0) target = $region5
    $region4: #{vae_forward.1} parent=1 // pred_region
      _
    $region5: #{vae_forward.1} parent=1 // pred_fallthru
      _
    // Predicated region
    $region6: #{vae_forward.1} parent=1 // pred_check
      _
    $region7: #{vae_forward.1} parent=1 // pred_check_branch
      %21 = sbr.rel (0) target = $region9
    $region8: #{vae_forward.1} parent=1 // pred_region
      _
    $region9: #{vae_forward.1} parent=1 // pred_fallthru
      _
    // Predicated region
    $region10: #{vae_forward.1} parent=1 // pred_check
      _
    $region11: #{vae_forward.1} parent=1 // pred_check_branch
      %23 = sbr.rel (0) target = $region13
    $region12: #{vae_forward.1} parent=1 // pred_region
      _
    $region13: #{vae_forward.1} parent=1 // pred_fallthru
      _
    // Predicated region
    $region14: #{vae_forward.1} parent=1 // pred_check
      _
    $region15: #{vae_forward.1} parent=1 // pred_check_branch
      %25 = sbr.rel (0) target = $region17
    $region16: #{vae_forward.1} parent=1 // pred_region
      _
    $region17: #{vae_forward.1} parent=1 // pred_fallthru
      _
    // Predicated region
    $region18: #{vae_forward.1} parent=1 // pred_check
      _
    $region19: #{vae_forward.1} parent=1 // pred_check_branch
      %27 = sbr.rel (0) target = $region21
    $region20: #{vae_forward.1} parent=1 // pred_region
      _
    $region21: #{vae_forward.1} parent=1 // pred_fallthru
      _
    // Predicated region
    $region22: #{vae_forward.1} parent=1 // pred_check
      _
    $region23: #{vae_forward.1} parent=1 // pred_check_branch
      %29 = sbr.rel (0) target = $region25
    $region24: #{vae_forward.1} parent=1 // pred_region
      _
    $region25: #{vae_forward.1} parent=1 // pred_fallthru
      _
    // Predicated region
    $region26: #{vae_forward.1} parent=1 // pred_check
      _
    $region27: #{vae_forward.1} parent=1 // pred_check_branch
      %31 = sbr.rel (0) target = $region29
    $region28: #{vae_forward.1} parent=1 // pred_region
      _
    $region29: #{vae_forward.1} parent=1 // pred_fallthru
      _
    // Predicated region
    $region30: #{vae_forward.1} parent=1 // pred_check
      _
    $region31: #{vae_forward.1} parent=1 // pred_check_branch
      %33 = sbr.rel (0) target = $region33
    $region32: #{vae_forward.1} parent=1 // pred_region
      _
    $region33: #{vae_forward.1} parent=1 // pred_fallthru
      _
    // Predicated region
    $region34: #{vae_forward.1} parent=1 // pred_check
      _
    $region35: #{vae_forward.1} parent=1 // pred_check_branch
      %35 = sbr.rel (0) target = $region37
    $region36: #{vae_forward.1} parent=1 // pred_region
      _
    $region37: #{vae_forward.1} parent=1 // pred_fallthru
      _
    // Predicated region
    $region38: #{vae_forward.1} parent=1 // pred_check
      _
    $region39: #{vae_forward.1} parent=1 // pred_check_branch
      %37 = sbr.rel (0) target = $region41
    $region40: #{vae_forward.1} parent=1 // pred_region
      _
    $region41: #{vae_forward.1} parent=1 // pred_fallthru
      _
    %v39 = vld [vmem:[%s0] sm:$0xff]
    %v40 = vld [vmem:[%s0 + $0x8] sm:$0xff]
    %v41 = vld [vmem:[%s0 + $0x10] sm:$0xff]
    %v42 = vld [vmem:[%s0 + $0x18] sm:$0xf]
    %v43 = vld [vmem:[%s1] sm:$0xff]
    %v44 = vld [vmem:[%s2] sm:$0xff]
    %v45 = vld [vmem:[%s2 + $0x8] sm:$0xff]
    %v46 = vld [vmem:[%s2 + $0x10] sm:$0xff]
    %v47 = vld [vmem:[%s2 + $0x18] sm:$0xff]
    %v48 = vld [vmem:[%s2 + $0x20] sm:$0xff]
    %v49 = vld [vmem:[%s2 + $0x28] sm:$0xff]
    %v50 = vld [vmem:[%s2 + $0x30] sm:$0xff]
    %v51 = vld [vmem:[%s2 + $0x38] sm:$0xff]
    %v52 = vld [vmem:[%s2 + $0x40] sm:$0xff]
    %v53 = vld [vmem:[%s2 + $0x48] sm:$0xff]
    %v54 = vld [vmem:[%s2 + $0x50] sm:$0xff]
    %v55 = vld [vmem:[%s2 + $0x58] sm:$0xff]
    %v56 = vld [vmem:[%s2 + $0x60] sm:$0xff]
    %v57 = vld [vmem:[%s2 + $0x68] sm:$0xff]
    %v58 = vld [vmem:[%s2 + $0x70] sm:$0xff]
    %v59 = vld [vmem:[%s2 + $0x78] sm:$0xff]
    %v60 = vld [vmem:[%s2 + $0x80] sm:$0xff]
    %v61 = vld [vmem:[%s2 + $0x88] sm:$0xff]
    %v62 = vld [vmem:[%s2 + $0x90] sm:$0xff]
    %v63 = vld [vmem:[%s2 + $0x98] sm:$0xff]
    %v64 = vld [vmem:[%s2 + $0xa0] sm:$0xff]
    %v65 = vld [vmem:[%s2 + $0xa8] sm:$0xff]
    %v66 = vld [vmem:[%s2 + $0xb0] sm:$0xff]
    %v67 = vld [vmem:[%s2 + $0xb8] sm:$0xff]
    %v68 = vld [vmem:[%s2 + $0xc0] sm:$0xff]
    %v69 = vld [vmem:[%s2 + $0xc8] sm:$0xff]
    %v70 = vld [vmem:[%s2 + $0xd0] sm:$0xff]
    %v71 = vld [vmem:[%s2 + $0xd8] sm:$0xff]
    %v72 = vld [vmem:[%s2 + $0xe0] sm:$0xff]
    %v73 = vld [vmem:[%s2 + $0xe8] sm:$0xff]
    %v74 = vld [vmem:[%s2 + $0xf0] sm:$0xff]
    %v75 = vld [vmem:[%s2 + $0xf8] sm:$0xff]
    %v76 = vld [vmem:[%s2 + $0x100] sm:$0xff]
    %v77 = vld [vmem:[%s2 + $0x108] sm:$0xff]
    %v78 = vld [vmem:[%s2 + $0x110] sm:$0xff]
    %v79 = vld [vmem:[%s2 + $0x118] sm:$0xff]
    %v80 = vld [vmem:[%s2 + $0x120] sm:$0xff]
    %v81 = vld [vmem:[%s2 + $0x128] sm:$0xff]
    %v82 = vld [vmem:[%s2 + $0x130] sm:$0xff]
    %v83 = vld [vmem:[%s2 + $0x138] sm:$0xff]
    %v84 = vld [vmem:[%s2 + $0x140] sm:$0xff]
    %v85 = vld [vmem:[%s2 + $0x148] sm:$0xff]
    %v86 = vld [vmem:[%s2 + $0x150] sm:$0xff]
    %v87 = vld [vmem:[%s2 + $0x158] sm:$0xff]
    %v88 = vld [vmem:[%s2 + $0x160] sm:$0xff]
    %v89 = vld [vmem:[%s2 + $0x168] sm:$0xff]
    %v90 = vld [vmem:[%s2 + $0x170] sm:$0xff]
    %v91 = vld [vmem:[%s2 + $0x178] sm:$0xff]
    %v92 = vld [vmem:[%s2 + $0x180] sm:$0xff]
    %v93 = vld [vmem:[%s2 + $0x188] sm:$0xff]
    %v94 = vld [vmem:[%s2 + $0x190] sm:$0xff]
    %v95 = vld [vmem:[%s2 + $0x198] sm:$0xff]
    %v96 = vld [vmem:[%s2 + $0x1a0] sm:$0xff]
    %v97 = vld [vmem:[%s2 + $0x1a8] sm:$0xff]
    %v98 = vld [vmem:[%s2 + $0x1b0] sm:$0xff]
    %v99 = vld [vmem:[%s2 + $0x1b8] sm:$0xff]
    %v100 = vld [vmem:[%s2 + $0x1c0] sm:$0xff]
    %v101 = vld [vmem:[%s2 + $0x1c8] sm:$0xff]
    %v102 = vld [vmem:[%s2 + $0x1d0] sm:$0xff]
    %v103 = vld [vmem:[%s2 + $0x1d8] sm:$0xff]
    %v104 = vld [vmem:[%s2 + $0x1e0] sm:$0xff]
    %v105 = vld [vmem:[%s2 + $0x1e8] sm:$0xff]
    %v106 = vld [vmem:[%s2 + $0x1f0] sm:$0xff]
    %v107 = vld [vmem:[%s2 + $0x1f8] sm:$0xff]
    %v108 = vld [vmem:[%s2 + $0x200] sm:$0xff]
    %v109 = vld [vmem:[%s2 + $0x208] sm:$0xff]
    %v110 = vld [vmem:[%s2 + $0x210] sm:$0xff]
    %v111 = vld [vmem:[%s2 + $0x218] sm:$0xff]
    %v112 = vld [vmem:[%s2 + $0x220] sm:$0xff]
    %v113 = vld [vmem:[%s2 + $0x228] sm:$0xff]
    %v114 = vld [vmem:[%s2 + $0x230] sm:$0xff]
    %v115 = vld [vmem:[%s2 + $0x238] sm:$0xff]
    %v116 = vld [vmem:[%s2 + $0x240] sm:$0xff]
    %v117 = vld [vmem:[%s2 + $0x248] sm:$0xff]
    %v118 = vld [vmem:[%s2 + $0x250] sm:$0xff]
    %v119 = vld [vmem:[%s2 + $0x258] sm:$0xff]
    %v120 = vld [vmem:[%s2 + $0x260] sm:$0xff]
    %v121 = vld [vmem:[%s2 + $0x268] sm:$0xff]
    %v122 = vld [vmem:[%s2 + $0x270] sm:$0xff]
    %v123 = vld [vmem:[%s2 + $0x278] sm:$0xff]
    %v124 = vld [vmem:[%s2 + $0x280] sm:$0xff]
    %v125 = vld [vmem:[%s2 + $0x288] sm:$0xff]
    %v126 = vld [vmem:[%s2 + $0x290] sm:$0xff]
    %v127 = vld [vmem:[%s2 + $0x298] sm:$0xff]
    %v128 = vld [vmem:[%s2 + $0x2a0] sm:$0xff]
    %v129 = vld [vmem:[%s2 + $0x2a8] sm:$0xff]
    %v130 = vld [vmem:[%s2 + $0x2b0] sm:$0xff]
    %v131 = vld [vmem:[%s2 + $0x2b8] sm:$0xff]
    %v132 = vld [vmem:[%s2 + $0x2c0] sm:$0xff]
    %v133 = vld [vmem:[%s2 + $0x2c8] sm:$0xff]
    %v134 = vld [vmem:[%s2 + $0x2d0] sm:$0xff]
    %v135 = vld [vmem:[%s2 + $0x2d8] sm:$0xff]
    %v136 = vld [vmem:[%s2 + $0x2e0] sm:$0xff]
    %v137 = vld [vmem:[%s2 + $0x2e8] sm:$0xff]
    %v138 = vld [vmem:[%s2 + $0x2f0] sm:$0xff]
    %v139 = vld [vmem:[%s2 + $0x2f8] sm:$0xff]
    %v140 = vld [vmem:[%s2 + $0x300] sm:$0xff]
    %v141 = vld [vmem:[%s2 + $0x308] sm:$0xff]
    %v142 = vld [vmem:[%s2 + $0x310] sm:$0xff]
    %v143 = vld [vmem:[%s2 + $0x318] sm:$0xff]
    %v144 = vld [vmem:[%s2 + $0x320] sm:$0xff]
    %v145 = vld [vmem:[%s2 + $0x328] sm:$0xff]
    %v146 = vld [vmem:[%s2 + $0x330] sm:$0xff]
    %v147 = vld [vmem:[%s2 + $0x338] sm:$0xff]
    %v148 = vld [vmem:[%s2 + $0x340] sm:$0xff]
    %v149 = vld [vmem:[%s2 + $0x348] sm:$0xff]
    %v150 = vld [vmem:[%s2 + $0x350] sm:$0xff]
    %v151 = vld [vmem:[%s2 + $0x358] sm:$0xff]
    %v152 = vld [vmem:[%s2 + $0x360] sm:$0xff]
    %v153 = vld [vmem:[%s2 + $0x368] sm:$0xff]
    %v154 = vld [vmem:[%s2 + $0x370] sm:$0xff]
    %v155 = vld [vmem:[%s2 + $0x378] sm:$0xff]
    %v156 = vld [vmem:[%s2 + $0x380] sm:$0xff]
    %v157 = vld [vmem:[%s2 + $0x388] sm:$0xff]
    %v158 = vld [vmem:[%s2 + $0x390] sm:$0xff]
    %v159 = vld [vmem:[%s2 + $0x398] sm:$0xff]
    %v160 = vld [vmem:[%s2 + $0x3a0] sm:$0xff]
    %v161 = vld [vmem:[%s2 + $0x3a8] sm:$0xff]
    %v162 = vld [vmem:[%s2 + $0x3b0] sm:$0xff]
    %v163 = vld [vmem:[%s2 + $0x3b8] sm:$0xff]
    %v164 = vld [vmem:[%s2 + $0x3c0] sm:$0xff]
    %v165 = vld [vmem:[%s2 + $0x3c8] sm:$0xff]
    %v166 = vld [vmem:[%s2 + $0x3d0] sm:$0xff]
    %v167 = vld [vmem:[%s2 + $0x3d8] sm:$0xff]
    %v168 = vld [vmem:[%s2 + $0x3e0] sm:$0xff]
    %v169 = vld [vmem:[%s2 + $0x3e8] sm:$0xff]
    %v170 = vld [vmem:[%s2 + $0x3f0] sm:$0xff]
    %v171 = vld [vmem:[%s2 + $0x3f8] sm:$0xff]
    %v172 = vld [vmem:[%s2 + $0x400] sm:$0xff]
    %v173 = vld [vmem:[%s2 + $0x408] sm:$0xff]
    %v174 = vld [vmem:[%s2 + $0x410] sm:$0xff]
    %v175 = vld [vmem:[%s2 + $0x418] sm:$0xff]
    %v176 = vld [vmem:[%s2 + $0x420] sm:$0xff]
    %v177 = vld [vmem:[%s2 + $0x428] sm:$0xff]
    %v178 = vld [vmem:[%s2 + $0x430] sm:$0xff]
    %v179 = vld [vmem:[%s2 + $0x438] sm:$0xff]
    %v180 = vld [vmem:[%s2 + $0x440] sm:$0xff]
    %v181 = vld [vmem:[%s2 + $0x448] sm:$0xff]
    %v182 = vld [vmem:[%s2 + $0x450] sm:$0xff]
    %v183 = vld [vmem:[%s2 + $0x458] sm:$0xff]
    %v184 = vld [vmem:[%s2 + $0x460] sm:$0xff]
    %v185 = vld [vmem:[%s2 + $0x468] sm:$0xff]
    %v186 = vld [vmem:[%s2 + $0x470] sm:$0xff]
    %v187 = vld [vmem:[%s2 + $0x478] sm:$0xff]
    %v188 = vld [vmem:[%s2 + $0x480] sm:$0xff]
    %v189 = vld [vmem:[%s2 + $0x488] sm:$0xff]
    %v190 = vld [vmem:[%s2 + $0x490] sm:$0xff]
    %v191 = vld [vmem:[%s2 + $0x498] sm:$0xff]
    %v192 = vld [vmem:[%s2 + $0x4a0] sm:$0xff]
    %v193 = vld [vmem:[%s2 + $0x4a8] sm:$0xff]
    %v194 = vld [vmem:[%s2 + $0x4b0] sm:$0xff]
    %v195 = vld [vmem:[%s2 + $0x4b8] sm:$0xff]
    %v196 = vld [vmem:[%s2 + $0x4c0] sm:$0xff]
    %v197 = vld [vmem:[%s2 + $0x4c8] sm:$0xff]
    %v198 = vld [vmem:[%s2 + $0x4d0] sm:$0xff]
    %v199 = vld [vmem:[%s2 + $0x4d8] sm:$0xff]
    %v200 = vld [vmem:[%s2 + $0x4e0] sm:$0xff]
    %v201 = vld [vmem:[%s2 + $0x4e8] sm:$0xff]
    %v202 = vld [vmem:[%s2 + $0x4f0] sm:$0xff]
    %v203 = vld [vmem:[%s2 + $0x4f8] sm:$0xff]
    %v204 = vld [vmem:[%s2 + $0x500] sm:$0xff]
    %v205 = vld [vmem:[%s2 + $0x508] sm:$0xff]
    %v206 = vld [vmem:[%s2 + $0x510] sm:$0xff]
    %v207 = vld [vmem:[%s2 + $0x518] sm:$0xff]
    %v208 = vld [vmem:[%s2 + $0x520] sm:$0xff]
    %v209 = vld [vmem:[%s2 + $0x528] sm:$0xff]
    %v210 = vld [vmem:[%s2 + $0x530] sm:$0xff]
    %v211 = vld [vmem:[%s2 + $0x538] sm:$0xff]
    %v212 = vld [vmem:[%s2 + $0x540] sm:$0xff]
    %v213 = vld [vmem:[%s2 + $0x548] sm:$0xff]
    %v214 = vld [vmem:[%s2 + $0x550] sm:$0xff]
    %v215 = vld [vmem:[%s2 + $0x558] sm:$0xff]
    %v216 = vld [vmem:[%s2 + $0x560] sm:$0xff]
    %v217 = vld [vmem:[%s2 + $0x568] sm:$0xff]
    %v218 = vld [vmem:[%s2 + $0x570] sm:$0xff]
    %v219 = vld [vmem:[%s2 + $0x578] sm:$0xff]
    %v220 = vld [vmem:[%s2 + $0x580] sm:$0xff]
    %v221 = vld [vmem:[%s2 + $0x588] sm:$0xff]
    %v222 = vld [vmem:[%s2 + $0x590] sm:$0xff]
    %v223 = vld [vmem:[%s2 + $0x598] sm:$0xff]
    %v224 = vld [vmem:[%s2 + $0x5a0] sm:$0xff]
    %v225 = vld [vmem:[%s2 + $0x5a8] sm:$0xff]
    %v226 = vld [vmem:[%s2 + $0x5b0] sm:$0xff]
    %v227 = vld [vmem:[%s2 + $0x5b8] sm:$0xff]
    %v228 = vld [vmem:[%s2 + $0x5c0] sm:$0xff]
    %v229 = vld [vmem:[%s2 + $0x5c8] sm:$0xff]
    %v230 = vld [vmem:[%s2 + $0x5d0] sm:$0xff]
    %v231 = vld [vmem:[%s2 + $0x5d8] sm:$0xff]
    %v232 = vld [vmem:[%s2 + $0x5e0] sm:$0xff]
    %v233 = vld [vmem:[%s2 + $0x5e8] sm:$0xff]
    %v234 = vld [vmem:[%s2 + $0x5f0] sm:$0xff]
    %v235 = vld [vmem:[%s2 + $0x5f8] sm:$0xff]
    %v236 = vld [vmem:[%s2 + $0x600] sm:$0xff]
    %v237 = vld [vmem:[%s2 + $0x608] sm:$0xff]
    %v238 = vld [vmem:[%s2 + $0x610] sm:$0xff]
    %v239 = vld [vmem:[%s2 + $0x618] sm:$0xff]
    %v240 = vld [vmem:[%s3] sm:$0xf]
    %v242 = vlaneseq
    %v243 = vshrl.u32 %v242, 7
    %v244 = vsub.s32 0, %v243
    %v245 = vrot.slane %v240, %v244
    %v246 = vlaneseq
    %v247 = vshrl.u32 %v246, 7
    %v248 = vsub.s32 1, %v247
    %v249 = vrot.slane %v240, %v248
    %v250 = vlaneseq
    %v251 = vshrl.u32 %v250, 7
    %v252 = vsub.s32 2, %v251
    %v253 = vrot.slane %v240, %v252
    %v254 = vlaneseq
    %v255 = vshrl.u32 %v254, 7
    %v256 = vsub.s32 3, %v255
    %v257 = vrot.slane %v240, %v256
    %v266 = vunpack.c.l.b16 %v39
    %v267 = vunpack.c.h.b16 %v39
    %v268 = vunpack.c.l.b16 %v40
    %v269 = vunpack.c.h.b16 %v40
    %v270 = vunpack.c.l.b16 %v41
    %v271 = vunpack.c.h.b16 %v41
    %v272 = vunpack.c.l.b16 %v42
    %v273 = vpack.c.b16 %v266, %v266
    %v274 = vpack.c.b16 %v267, %v267
    %v275 = vpack.c.b16 %v268, %v268
    %v276 = vpack.c.b16 %v269, %v269
    %v277 = vpack.c.b16 %v270, %v270
    %v278 = vpack.c.b16 %v271, %v271
    %v279 = vpack.c.b16 %v272, %v272
    %v482 = vunpack.c.l.b16 %v44
    %v483 = vunpack.c.h.b16 %v44
    %v484 = vunpack.c.l.b16 %v45
    %v485 = vunpack.c.h.b16 %v45
    %v486 = vunpack.c.l.b16 %v46
    %v487 = vunpack.c.h.b16 %v46
    %v488 = vunpack.c.l.b16 %v47
    %v489 = vunpack.c.h.b16 %v47
    %v490 = vunpack.c.l.b16 %v48
    %v491 = vunpack.c.h.b16 %v48
    %v492 = vunpack.c.l.b16 %v49
    %v493 = vunpack.c.h.b16 %v49
    %v494 = vunpack.c.l.b16 %v50
    %v495 = vunpack.c.h.b16 %v50
    %v496 = vunpack.c.l.b16 %v51
    %v497 = vunpack.c.h.b16 %v51
    %v498 = vunpack.c.l.b16 %v52
    %v499 = vunpack.c.h.b16 %v52
    %v500 = vunpack.c.l.b16 %v53
    %v501 = vunpack.c.h.b16 %v53
    %v502 = vunpack.c.l.b16 %v54
    %v503 = vunpack.c.h.b16 %v54
    %v504 = vunpack.c.l.b16 %v55
    %v505 = vunpack.c.h.b16 %v55
    %v506 = vunpack.c.l.b16 %v56
    %v507 = vunpack.c.h.b16 %v56
    %v508 = vunpack.c.l.b16 %v57
    %v509 = vunpack.c.h.b16 %v57
    %v510 = vunpack.c.l.b16 %v58
    %v511 = vunpack.c.h.b16 %v58
    %v512 = vunpack.c.l.b16 %v59
    %v513 = vunpack.c.h.b16 %v59
    %v514 = vunpack.c.l.b16 %v60
    %v515 = vunpack.c.h.b16 %v60
    %v516 = vunpack.c.l.b16 %v61
    %v517 = vunpack.c.h.b16 %v61
    %v518 = vunpack.c.l.b16 %v62
    %v519 = vunpack.c.h.b16 %v62
    %v520 = vunpack.c.l.b16 %v63
    %v521 = vunpack.c.h.b16 %v63
    %v522 = vunpack.c.l.b16 %v64
    %v523 = vunpack.c.h.b16 %v64
    %v524 = vunpack.c.l.b16 %v65
    %v525 = vunpack.c.h.b16 %v65
    %v526 = vunpack.c.l.b16 %v66
    %v527 = vunpack.c.h.b16 %v66
    %v528 = vunpack.c.l.b16 %v67
    %v529 = vunpack.c.h.b16 %v67
    %v530 = vunpack.c.l.b16 %v68
    %v531 = vunpack.c.h.b16 %v68
    %v532 = vunpack.c.l.b16 %v69
    %v533 = vunpack.c.h.b16 %v69
    %v534 = vunpack.c.l.b16 %v70
    %v535 = vunpack.c.h.b16 %v70
    %v536 = vunpack.c.l.b16 %v71
    %v537 = vunpack.c.h.b16 %v71
    %v538 = vunpack.c.l.b16 %v72
    %v539 = vunpack.c.h.b16 %v72
    %v540 = vunpack.c.l.b16 %v73
    %v541 = vunpack.c.h.b16 %v73
    %v542 = vunpack.c.l.b16 %v74
    %v543 = vunpack.c.h.b16 %v74
    %v544 = vunpack.c.l.b16 %v75
    %v545 = vunpack.c.h.b16 %v75
    %v546 = vunpack.c.l.b16 %v76
    %v547 = vunpack.c.h.b16 %v76
    %v548 = vunpack.c.l.b16 %v77
    %v549 = vunpack.c.h.b16 %v77
    %v550 = vunpack.c.l.b16 %v78
    %v551 = vunpack.c.h.b16 %v78
    %v552 = vunpack.c.l.b16 %v79
    %v553 = vunpack.c.h.b16 %v79
    %v554 = vunpack.c.l.b16 %v80
    %v555 = vunpack.c.h.b16 %v80
    %v556 = vunpack.c.l.b16 %v81
    %v557 = vunpack.c.h.b16 %v81
    %v558 = vunpack.c.l.b16 %v82
    %v559 = vunpack.c.h.b16 %v82
    %v560 = vunpack.c.l.b16 %v83
    %v561 = vunpack.c.h.b16 %v83
    %v562 = vunpack.c.l.b16 %v84
    %v563 = vunpack.c.h.b16 %v84
    %v564 = vunpack.c.l.b16 %v85
    %v565 = vunpack.c.h.b16 %v85
    %v566 = vunpack.c.l.b16 %v86
    %v567 = vunpack.c.h.b16 %v86
    %v568 = vunpack.c.l.b16 %v87
    %v569 = vunpack.c.h.b16 %v87
    %v570 = vunpack.c.l.b16 %v88
    %v571 = vunpack.c.h.b16 %v88
    %v572 = vunpack.c.l.b16 %v89
    %v573 = vunpack.c.h.b16 %v89
    %v574 = vunpack.c.l.b16 %v90
    %v575 = vunpack.c.h.b16 %v90
    %v576 = vunpack.c.l.b16 %v91
    %v577 = vunpack.c.h.b16 %v91
    %v578 = vunpack.c.l.b16 %v92
    %v579 = vunpack.c.h.b16 %v92
    %v580 = vunpack.c.l.b16 %v93
    %v581 = vunpack.c.h.b16 %v93
    %v582 = vunpack.c.l.b16 %v94
    %v583 = vunpack.c.h.b16 %v94
    %v584 = vunpack.c.l.b16 %v95
    %v585 = vunpack.c.h.b16 %v95
    %v586 = vunpack.c.l.b16 %v96
    %v587 = vunpack.c.h.b16 %v96
    %v588 = vunpack.c.l.b16 %v97
    %v589 = vunpack.c.h.b16 %v97
    %v590 = vunpack.c.l.b16 %v98
    %v591 = vunpack.c.h.b16 %v98
    %v592 = vunpack.c.l.b16 %v99
    %v593 = vunpack.c.h.b16 %v99
    %v594 = vunpack.c.l.b16 %v100
    %v595 = vunpack.c.h.b16 %v100
    %v596 = vunpack.c.l.b16 %v101
    %v597 = vunpack.c.h.b16 %v101
    %v598 = vunpack.c.l.b16 %v102
    %v599 = vunpack.c.h.b16 %v102
    %v600 = vunpack.c.l.b16 %v103
    %v601 = vunpack.c.h.b16 %v103
    %v602 = vunpack.c.l.b16 %v104
    %v603 = vunpack.c.h.b16 %v104
    %v604 = vunpack.c.l.b16 %v105
    %v605 = vunpack.c.h.b16 %v105
    %v606 = vunpack.c.l.b16 %v106
    %v607 = vunpack.c.h.b16 %v106
    %v608 = vunpack.c.l.b16 %v107
    %v609 = vunpack.c.h.b16 %v107
    %v610 = vunpack.c.l.b16 %v108
    %v611 = vunpack.c.h.b16 %v108
    %v612 = vunpack.c.l.b16 %v109
    %v613 = vunpack.c.h.b16 %v109
    %v614 = vunpack.c.l.b16 %v110
    %v615 = vunpack.c.h.b16 %v110
    %v616 = vunpack.c.l.b16 %v111
    %v617 = vunpack.c.h.b16 %v111
    %v618 = vunpack.c.l.b16 %v112
    %v619 = vunpack.c.h.b16 %v112
    %v620 = vunpack.c.l.b16 %v113
    %v621 = vunpack.c.h.b16 %v113
    %v622 = vunpack.c.l.b16 %v114
    %v623 = vunpack.c.h.b16 %v114
    %v624 = vunpack.c.l.b16 %v115
    %v625 = vunpack.c.h.b16 %v115
    %v626 = vunpack.c.l.b16 %v116
    %v627 = vunpack.c.h.b16 %v116
    %v628 = vunpack.c.l.b16 %v117
    %v629 = vunpack.c.h.b16 %v117
    %v630 = vunpack.c.l.b16 %v118
    %v631 = vunpack.c.h.b16 %v118
    %v632 = vunpack.c.l.b16 %v119
    %v633 = vunpack.c.h.b16 %v119
    %v634 = vunpack.c.l.b16 %v120
    %v635 = vunpack.c.h.b16 %v120
    %v636 = vunpack.c.l.b16 %v121
    %v637 = vunpack.c.h.b16 %v121
    %v638 = vunpack.c.l.b16 %v122
    %v639 = vunpack.c.h.b16 %v122
    %v640 = vunpack.c.l.b16 %v123
    %v641 = vunpack.c.h.b16 %v123
    %v642 = vunpack.c.l.b16 %v124
    %v643 = vunpack.c.h.b16 %v124
    %v644 = vunpack.c.l.b16 %v125
    %v645 = vunpack.c.h.b16 %v125
    %v646 = vunpack.c.l.b16 %v126
    %v647 = vunpack.c.h.b16 %v126
    %v648 = vunpack.c.l.b16 %v127
    %v649 = vunpack.c.h.b16 %v127
    %v650 = vunpack.c.l.b16 %v128
    %v651 = vunpack.c.h.b16 %v128
    %v652 = vunpack.c.l.b16 %v129
    %v653 = vunpack.c.h.b16 %v129
    %v654 = vunpack.c.l.b16 %v130
    %v655 = vunpack.c.h.b16 %v130
    %v656 = vunpack.c.l.b16 %v131
    %v657 = vunpack.c.h.b16 %v131
    %v658 = vunpack.c.l.b16 %v132
    %v659 = vunpack.c.h.b16 %v132
    %v660 = vunpack.c.l.b16 %v133
    %v661 = vunpack.c.h.b16 %v133
    %v662 = vunpack.c.l.b16 %v134
    %v663 = vunpack.c.h.b16 %v134
    %v664 = vunpack.c.l.b16 %v135
    %v665 = vunpack.c.h.b16 %v135
    %v666 = vunpack.c.l.b16 %v136
    %v667 = vunpack.c.h.b16 %v136
    %v668 = vunpack.c.l.b16 %v137
    %v669 = vunpack.c.h.b16 %v137
    %v670 = vunpack.c.l.b16 %v138
    %v671 = vunpack.c.h.b16 %v138
    %v672 = vunpack.c.l.b16 %v139
    %v673 = vunpack.c.h.b16 %v139
    %v674 = vunpack.c.l.b16 %v140
    %v675 = vunpack.c.h.b16 %v140
    %v676 = vunpack.c.l.b16 %v141
    %v677 = vunpack.c.h.b16 %v141
    %v678 = vunpack.c.l.b16 %v142
    %v679 = vunpack.c.h.b16 %v142
    %v680 = vunpack.c.l.b16 %v143
    %v681 = vunpack.c.h.b16 %v143
    %v682 = vunpack.c.l.b16 %v144
    %v683 = vunpack.c.h.b16 %v144
    %v684 = vunpack.c.l.b16 %v145
    %v685 = vunpack.c.h.b16 %v145
    %v686 = vunpack.c.l.b16 %v146
    %v687 = vunpack.c.h.b16 %v146
    %v688 = vunpack.c.l.b16 %v147
    %v689 = vunpack.c.h.b16 %v147
    %v690 = vunpack.c.l.b16 %v148
    %v691 = vunpack.c.h.b16 %v148
    %v692 = vunpack.c.l.b16 %v149
    %v693 = vunpack.c.h.b16 %v149
    %v694 = vunpack.c.l.b16 %v150
    %v695 = vunpack.c.h.b16 %v150
    %v696 = vunpack.c.l.b16 %v151
    %v697 = vunpack.c.h.b16 %v151
    %v698 = vunpack.c.l.b16 %v152
    %v699 = vunpack.c.h.b16 %v152
    %v700 = vunpack.c.l.b16 %v153
    %v701 = vunpack.c.h.b16 %v153
    %v702 = vunpack.c.l.b16 %v154
    %v703 = vunpack.c.h.b16 %v154
    %v704 = vunpack.c.l.b16 %v155
    %v705 = vunpack.c.h.b16 %v155
    %v706 = vunpack.c.l.b16 %v156
    %v707 = vunpack.c.h.b16 %v156
    %v708 = vunpack.c.l.b16 %v157
    %v709 = vunpack.c.h.b16 %v157
    %v710 = vunpack.c.l.b16 %v158
    %v711 = vunpack.c.h.b16 %v158
    %v712 = vunpack.c.l.b16 %v159
    %v713 = vunpack.c.h.b16 %v159
    %v714 = vunpack.c.l.b16 %v160
    %v715 = vunpack.c.h.b16 %v160
    %v716 = vunpack.c.l.b16 %v161
    %v717 = vunpack.c.h.b16 %v161
    %v718 = vunpack.c.l.b16 %v162
    %v719 = vunpack.c.h.b16 %v162
    %v720 = vunpack.c.l.b16 %v163
    %v721 = vunpack.c.h.b16 %v163
    %v722 = vunpack.c.l.b16 %v164
    %v723 = vunpack.c.h.b16 %v164
    %v724 = vunpack.c.l.b16 %v165
    %v725 = vunpack.c.h.b16 %v165
    %v726 = vunpack.c.l.b16 %v166
    %v727 = vunpack.c.h.b16 %v166
    %v728 = vunpack.c.l.b16 %v167
    %v729 = vunpack.c.h.b16 %v167
    %v730 = vunpack.c.l.b16 %v168
    %v731 = vunpack.c.h.b16 %v168
    %v732 = vunpack.c.l.b16 %v169
    %v733 = vunpack.c.h.b16 %v169
    %v734 = vunpack.c.l.b16 %v170
    %v735 = vunpack.c.h.b16 %v170
    %v736 = vunpack.c.l.b16 %v171
    %v737 = vunpack.c.h.b16 %v171
    %v738 = vunpack.c.l.b16 %v172
    %v739 = vunpack.c.h.b16 %v172
    %v740 = vunpack.c.l.b16 %v173
    %v741 = vunpack.c.h.b16 %v173
    %v742 = vunpack.c.l.b16 %v174
    %v743 = vunpack.c.h.b16 %v174
    %v744 = vunpack.c.l.b16 %v175
    %v745 = vunpack.c.h.b16 %v175
    %v746 = vunpack.c.l.b16 %v176
    %v747 = vunpack.c.h.b16 %v176
    %v748 = vunpack.c.l.b16 %v177
    %v749 = vunpack.c.h.b16 %v177
    %v750 = vunpack.c.l.b16 %v178
    %v751 = vunpack.c.h.b16 %v178
    %v752 = vunpack.c.l.b16 %v179
    %v753 = vunpack.c.h.b16 %v179
    %v754 = vunpack.c.l.b16 %v180
    %v755 = vunpack.c.h.b16 %v180
    %v756 = vunpack.c.l.b16 %v181
    %v757 = vunpack.c.h.b16 %v181
    %v758 = vunpack.c.l.b16 %v182
    %v759 = vunpack.c.h.b16 %v182
    %v760 = vunpack.c.l.b16 %v183
    %v761 = vunpack.c.h.b16 %v183
    %v762 = vunpack.c.l.b16 %v184
    %v763 = vunpack.c.h.b16 %v184
    %v764 = vunpack.c.l.b16 %v185
    %v765 = vunpack.c.h.b16 %v185
    %v766 = vunpack.c.l.b16 %v186
    %v767 = vunpack.c.h.b16 %v186
    %v768 = vunpack.c.l.b16 %v187
    %v769 = vunpack.c.h.b16 %v187
    %v770 = vunpack.c.l.b16 %v188
    %v771 = vunpack.c.h.b16 %v188
    %v772 = vunpack.c.l.b16 %v189
    %v773 = vunpack.c.h.b16 %v189
    %v774 = vunpack.c.l.b16 %v190
    %v775 = vunpack.c.h.b16 %v190
    %v776 = vunpack.c.l.b16 %v191
    %v777 = vunpack.c.h.b16 %v191
    %v778 = vunpack.c.l.b16 %v192
    %v779 = vunpack.c.h.b16 %v192
    %v780 = vunpack.c.l.b16 %v193
    %v781 = vunpack.c.h.b16 %v193
    %v782 = vunpack.c.l.b16 %v194
    %v783 = vunpack.c.h.b16 %v194
    %v784 = vunpack.c.l.b16 %v195
    %v785 = vunpack.c.h.b16 %v195
    %v786 = vunpack.c.l.b16 %v196
    %v787 = vunpack.c.h.b16 %v196
    %v788 = vunpack.c.l.b16 %v197
    %v789 = vunpack.c.h.b16 %v197
    %v790 = vunpack.c.l.b16 %v198
    %v791 = vunpack.c.h.b16 %v198
    %v792 = vunpack.c.l.b16 %v199
    %v793 = vunpack.c.h.b16 %v199
    %v794 = vunpack.c.l.b16 %v200
    %v795 = vunpack.c.h.b16 %v200
    %v796 = vunpack.c.l.b16 %v201
    %v797 = vunpack.c.h.b16 %v201
    %v798 = vunpack.c.l.b16 %v202
    %v799 = vunpack.c.h.b16 %v202
    %v800 = vunpack.c.l.b16 %v203
    %v801 = vunpack.c.h.b16 %v203
    %v802 = vunpack.c.l.b16 %v204
    %v803 = vunpack.c.h.b16 %v204
    %v804 = vunpack.c.l.b16 %v205
    %v805 = vunpack.c.h.b16 %v205
    %v806 = vunpack.c.l.b16 %v206
    %v807 = vunpack.c.h.b16 %v206
    %v808 = vunpack.c.l.b16 %v207
    %v809 = vunpack.c.h.b16 %v207
    %v810 = vunpack.c.l.b16 %v208
    %v811 = vunpack.c.h.b16 %v208
    %v812 = vunpack.c.l.b16 %v209
    %v813 = vunpack.c.h.b16 %v209
    %v814 = vunpack.c.l.b16 %v210
    %v815 = vunpack.c.h.b16 %v210
    %v816 = vunpack.c.l.b16 %v211
    %v817 = vunpack.c.h.b16 %v211
    %v818 = vunpack.c.l.b16 %v212
    %v819 = vunpack.c.h.b16 %v212
    %v820 = vunpack.c.l.b16 %v213
    %v821 = vunpack.c.h.b16 %v213
    %v822 = vunpack.c.l.b16 %v214
    %v823 = vunpack.c.h.b16 %v214
    %v824 = vunpack.c.l.b16 %v215
    %v825 = vunpack.c.h.b16 %v215
    %v826 = vunpack.c.l.b16 %v216
    %v827 = vunpack.c.h.b16 %v216
    %v828 = vunpack.c.l.b16 %v217
    %v829 = vunpack.c.h.b16 %v217
    %v830 = vunpack.c.l.b16 %v218
    %v831 = vunpack.c.h.b16 %v218
    %v832 = vunpack.c.l.b16 %v219
    %v833 = vunpack.c.h.b16 %v219
    %v834 = vunpack.c.l.b16 %v220
    %v835 = vunpack.c.h.b16 %v220
    %v836 = vunpack.c.l.b16 %v221
    %v837 = vunpack.c.h.b16 %v221
    %v838 = vunpack.c.l.b16 %v222
    %v839 = vunpack.c.h.b16 %v222
    %v840 = vunpack.c.l.b16 %v223
    %v841 = vunpack.c.h.b16 %v223
    %v842 = vunpack.c.l.b16 %v224
    %v843 = vunpack.c.h.b16 %v224
    %v844 = vunpack.c.l.b16 %v225
    %v845 = vunpack.c.h.b16 %v225
    %v846 = vunpack.c.l.b16 %v226
    %v847 = vunpack.c.h.b16 %v226
    %v848 = vunpack.c.l.b16 %v227
    %v849 = vunpack.c.h.b16 %v227
    %v850 = vunpack.c.l.b16 %v228
    %v851 = vunpack.c.h.b16 %v228
    %v852 = vunpack.c.l.b16 %v229
    %v853 = vunpack.c.h.b16 %v229
    %v854 = vunpack.c.l.b16 %v230
    %v855 = vunpack.c.h.b16 %v230
    %v856 = vunpack.c.l.b16 %v231
    %v857 = vunpack.c.h.b16 %v231
    %v858 = vunpack.c.l.b16 %v232
    %v859 = vunpack.c.h.b16 %v232
    %v860 = vunpack.c.l.b16 %v233
    %v861 = vunpack.c.h.b16 %v233
    %v862 = vunpack.c.l.b16 %v234
    %v863 = vunpack.c.h.b16 %v234
    %v864 = vunpack.c.l.b16 %v235
    %v865 = vunpack.c.h.b16 %v235
    %v866 = vunpack.c.l.b16 %v236
    %v867 = vunpack.c.h.b16 %v236
    %v868 = vunpack.c.l.b16 %v237
    %v869 = vunpack.c.h.b16 %v237
    %v870 = vunpack.c.l.b16 %v238
    %v871 = vunpack.c.h.b16 %v238
    %v872 = vunpack.c.l.b16 %v239
    %v873 = vunpack.c.h.b16 %v239
    %v874 = vpack.c.b16 %v486, %v482
    %v875 = vpack.c.b16 %v487, %v483
    %v876 = vpack.c.b16 %v488, %v484
    %v877 = vpack.c.b16 %v489, %v485
    %v878 = vpack.c.b16 %v494, %v490
    %v879 = vpack.c.b16 %v495, %v491
    %v880 = vpack.c.b16 %v496, %v492
    %v881 = vpack.c.b16 %v497, %v493
    %v882 = vpack.c.b16 %v502, %v498
    %v883 = vpack.c.b16 %v503, %v499
    %v884 = vpack.c.b16 %v504, %v500
    %v885 = vpack.c.b16 %v505, %v501
    %v886 = vpack.c.b16 %v510, %v506
    %v887 = vpack.c.b16 %v511, %v507
    %v888 = vpack.c.b16 %v512, %v508
    %v889 = vpack.c.b16 %v513, %v509
    %v890 = vpack.c.b16 %v518, %v514
    %v891 = vpack.c.b16 %v519, %v515
    %v892 = vpack.c.b16 %v520, %v516
    %v893 = vpack.c.b16 %v521, %v517
    %v894 = vpack.c.b16 %v526, %v522
    %v895 = vpack.c.b16 %v527, %v523
    %v896 = vpack.c.b16 %v528, %v524
    %v897 = vpack.c.b16 %v529, %v525
    %v898 = vpack.c.b16 %v534, %v530
    %v899 = vpack.c.b16 %v535, %v531
    %v900 = vpack.c.b16 %v536, %v532
    %v901 = vpack.c.b16 %v537, %v533
    %v902 = vpack.c.b16 %v542, %v538
    %v903 = vpack.c.b16 %v543, %v539
    %v904 = vpack.c.b16 %v544, %v540
    %v905 = vpack.c.b16 %v545, %v541
    %v906 = vpack.c.b16 %v550, %v546
    %v907 = vpack.c.b16 %v551, %v547
    %v908 = vpack.c.b16 %v552, %v548
    %v909 = vpack.c.b16 %v553, %v549
    %v910 = vpack.c.b16 %v558, %v554
    %v911 = vpack.c.b16 %v559, %v555
    %v912 = vpack.c.b16 %v560, %v556
    %v913 = vpack.c.b16 %v561, %v557
    %v914 = vpack.c.b16 %v566, %v562
    %v915 = vpack.c.b16 %v567, %v563
    %v916 = vpack.c.b16 %v568, %v564
    %v917 = vpack.c.b16 %v569, %v565
    %v918 = vpack.c.b16 %v574, %v570
    %v919 = vpack.c.b16 %v575, %v571
    %v920 = vpack.c.b16 %v576, %v572
    %v921 = vpack.c.b16 %v577, %v573
    %v922 = vpack.c.b16 %v582, %v578
    %v923 = vpack.c.b16 %v583, %v579
    %v924 = vpack.c.b16 %v584, %v580
    %v925 = vpack.c.b16 %v585, %v581
    %v926 = vpack.c.b16 %v590, %v586
    %v927 = vpack.c.b16 %v591, %v587
    %v928 = vpack.c.b16 %v592, %v588
    %v929 = vpack.c.b16 %v593, %v589
    %v930 = vpack.c.b16 %v598, %v594
    %v931 = vpack.c.b16 %v599, %v595
    %v932 = vpack.c.b16 %v600, %v596
    %v933 = vpack.c.b16 %v601, %v597
    %v934 = vpack.c.b16 %v606, %v602
    %v935 = vpack.c.b16 %v607, %v603
    %v936 = vpack.c.b16 %v608, %v604
    %v937 = vpack.c.b16 %v609, %v605
    %v938 = vpack.c.b16 %v614, %v610
    %v939 = vpack.c.b16 %v615, %v611
    %v940 = vpack.c.b16 %v616, %v612
    %v941 = vpack.c.b16 %v617, %v613
    %v942 = vpack.c.b16 %v622, %v618
    %v943 = vpack.c.b16 %v623, %v619
    %v944 = vpack.c.b16 %v624, %v620
    %v945 = vpack.c.b16 %v625, %v621
    %v946 = vpack.c.b16 %v630, %v626
    %v947 = vpack.c.b16 %v631, %v627
    %v948 = vpack.c.b16 %v632, %v628
    %v949 = vpack.c.b16 %v633, %v629
    %v950 = vpack.c.b16 %v638, %v634
    %v951 = vpack.c.b16 %v639, %v635
    %v952 = vpack.c.b16 %v640, %v636
    %v953 = vpack.c.b16 %v641, %v637
    %v954 = vpack.c.b16 %v646, %v642
    %v955 = vpack.c.b16 %v647, %v643
    %v956 = vpack.c.b16 %v648, %v644
    %v957 = vpack.c.b16 %v649, %v645
    %v958 = vpack.c.b16 %v654, %v650
    %v959 = vpack.c.b16 %v655, %v651
    %v960 = vpack.c.b16 %v656, %v652
    %v961 = vpack.c.b16 %v657, %v653
    %v962 = vpack.c.b16 %v662, %v658
    %v963 = vpack.c.b16 %v663, %v659
    %v964 = vpack.c.b16 %v664, %v660
    %v965 = vpack.c.b16 %v665, %v661
    %v966 = vpack.c.b16 %v670, %v666
    %v967 = vpack.c.b16 %v671, %v667
    %v968 = vpack.c.b16 %v672, %v668
    %v969 = vpack.c.b16 %v673, %v669
    %v970 = vpack.c.b16 %v678, %v674
    %v971 = vpack.c.b16 %v679, %v675
    %v972 = vpack.c.b16 %v680, %v676
    %v973 = vpack.c.b16 %v681, %v677
    %v974 = vpack.c.b16 %v686, %v682
    %v975 = vpack.c.b16 %v687, %v683
    %v976 = vpack.c.b16 %v688, %v684
    %v977 = vpack.c.b16 %v689, %v685
    %v978 = vpack.c.b16 %v694, %v690
    %v979 = vpack.c.b16 %v695, %v691
    %v980 = vpack.c.b16 %v696, %v692
    %v981 = vpack.c.b16 %v697, %v693
    %v982 = vpack.c.b16 %v702, %v698
    %v983 = vpack.c.b16 %v703, %v699
    %v984 = vpack.c.b16 %v704, %v700
    %v985 = vpack.c.b16 %v705, %v701
    %v986 = vpack.c.b16 %v710, %v706
    %v987 = vpack.c.b16 %v711, %v707
    %v988 = vpack.c.b16 %v712, %v708
    %v989 = vpack.c.b16 %v713, %v709
    %v990 = vpack.c.b16 %v718, %v714
    %v991 = vpack.c.b16 %v719, %v715
    %v992 = vpack.c.b16 %v720, %v716
    %v993 = vpack.c.b16 %v721, %v717
    %v994 = vpack.c.b16 %v726, %v722
    %v995 = vpack.c.b16 %v727, %v723
    %v996 = vpack.c.b16 %v728, %v724
    %v997 = vpack.c.b16 %v729, %v725
    %v998 = vpack.c.b16 %v734, %v730
    %v999 = vpack.c.b16 %v735, %v731
    %v1000 = vpack.c.b16 %v736, %v732
    %v1001 = vpack.c.b16 %v737, %v733
    %v1002 = vpack.c.b16 %v742, %v738
    %v1003 = vpack.c.b16 %v743, %v739
    %v1004 = vpack.c.b16 %v744, %v740
    %v1005 = vpack.c.b16 %v745, %v741
    %v1006 = vpack.c.b16 %v750, %v746
    %v1007 = vpack.c.b16 %v751, %v747
    %v1008 = vpack.c.b16 %v752, %v748
    %v1009 = vpack.c.b16 %v753, %v749
    %v1010 = vpack.c.b16 %v758, %v754
    %v1011 = vpack.c.b16 %v759, %v755
    %v1012 = vpack.c.b16 %v760, %v756
    %v1013 = vpack.c.b16 %v761, %v757
    %v1014 = vpack.c.b16 %v766, %v762
    %v1015 = vpack.c.b16 %v767, %v763
    %v1016 = vpack.c.b16 %v768, %v764
    %v1017 = vpack.c.b16 %v769, %v765
    %v1018 = vpack.c.b16 %v774, %v770
    %v1019 = vpack.c.b16 %v775, %v771
    %v1020 = vpack.c.b16 %v776, %v772
    %v1021 = vpack.c.b16 %v777, %v773
    %v1022 = vpack.c.b16 %v782, %v778
    %v1023 = vpack.c.b16 %v783, %v779
    %v1024 = vpack.c.b16 %v784, %v780
    %v1025 = vpack.c.b16 %v785, %v781
    %v1026 = vpack.c.b16 %v790, %v786
    %v1027 = vpack.c.b16 %v791, %v787
    %v1028 = vpack.c.b16 %v792, %v788
    %v1029 = vpack.c.b16 %v793, %v789
    %v1030 = vpack.c.b16 %v798, %v794
    %v1031 = vpack.c.b16 %v799, %v795
    %v1032 = vpack.c.b16 %v800, %v796
    %v1033 = vpack.c.b16 %v801, %v797
    %v1034 = vpack.c.b16 %v806, %v802
    %v1035 = vpack.c.b16 %v807, %v803
    %v1036 = vpack.c.b16 %v808, %v804
    %v1037 = vpack.c.b16 %v809, %v805
    %v1038 = vpack.c.b16 %v814, %v810
    %v1039 = vpack.c.b16 %v815, %v811
    %v1040 = vpack.c.b16 %v816, %v812
    %v1041 = vpack.c.b16 %v817, %v813
    %v1042 = vpack.c.b16 %v822, %v818
    %v1043 = vpack.c.b16 %v823, %v819
    %v1044 = vpack.c.b16 %v824, %v820
    %v1045 = vpack.c.b16 %v825, %v821
    %v1046 = vpack.c.b16 %v830, %v826
    %v1047 = vpack.c.b16 %v831, %v827
    %v1048 = vpack.c.b16 %v832, %v828
    %v1049 = vpack.c.b16 %v833, %v829
    %v1050 = vpack.c.b16 %v838, %v834
    %v1051 = vpack.c.b16 %v839, %v835
    %v1052 = vpack.c.b16 %v840, %v836
    %v1053 = vpack.c.b16 %v841, %v837
    %v1054 = vpack.c.b16 %v846, %v842
    %v1055 = vpack.c.b16 %v847, %v843
    %v1056 = vpack.c.b16 %v848, %v844
    %v1057 = vpack.c.b16 %v849, %v845
    %v1058 = vpack.c.b16 %v854, %v850
    %v1059 = vpack.c.b16 %v855, %v851
    %v1060 = vpack.c.b16 %v856, %v852
    %v1061 = vpack.c.b16 %v857, %v853
    %v1062 = vpack.c.b16 %v862, %v858
    %v1063 = vpack.c.b16 %v863, %v859
    %v1064 = vpack.c.b16 %v864, %v860
    %v1065 = vpack.c.b16 %v865, %v861
    %v1066 = vpack.c.b16 %v870, %v866
    %v1067 = vpack.c.b16 %v871, %v867
    %v1068 = vpack.c.b16 %v872, %v868
    %v1069 = vpack.c.b16 %v873, %v869
    %vm1266 = vcmask 130048
    %v1268 = vsel %vm1266, %v279, 0
    %1270 = vmatprep.subr.bf16.mxu0 %v903
    %1271 = vmatpush1.bf16.msra.mxu0 %v902
    %1272 = vmatprep.subr.bf16.mxu0 %v899
    %1273 = vmatpush1.bf16.msra.mxu0 %v898
    %1274 = vmatprep.subr.bf16.mxu0 %v895
    %1275 = vmatpush1.bf16.msra.mxu0 %v894
    %1276 = vmatprep.subr.bf16.mxu0 %v891
    %1277 = vmatpush1.bf16.msra.mxu0 %v890
    %1278 = vmatprep.subr.bf16.mxu0 %v887
    %1279 = vmatpush1.bf16.msra.mxu0 %v886
    %1280 = vmatprep.subr.bf16.mxu0 %v883
    %1281 = vmatpush1.bf16.msra.mxu0 %v882
    %1282 = vmatprep.subr.bf16.mxu0 %v879
    %1283 = vmatpush1.bf16.msra.mxu0 %v878
    %1284 = vmatprep.subr.bf16.mxu0 %v875
    %1285 = vmatpush1.bf16.msra.mxu0 %v874
    %1286 = vmatprep.subr.bf16.mxu0 %v935
    %1287 = vmatpush2.bf16.msra.mxu0 %v934
    %1288 = vmatprep.subr.bf16.mxu0 %v931
    %1289 = vmatpush2.bf16.msra.mxu0 %v930
    %1290 = vmatprep.subr.bf16.mxu0 %v927
    %1291 = vmatpush2.bf16.msra.mxu0 %v926
    %1292 = vmatprep.subr.bf16.mxu0 %v923
    %1293 = vmatpush2.bf16.msra.mxu0 %v922
    %1294 = vmatprep.subr.bf16.mxu0 %v919
    %1295 = vmatpush2.bf16.msra.mxu0 %v918
    %1296 = vmatprep.subr.bf16.mxu0 %v915
    %1297 = vmatpush2.bf16.msra.mxu0 %v914
    %1298 = vmatprep.subr.bf16.mxu0 %v911
    %1299 = vmatpush2.bf16.msra.mxu0 %v910
    %1300 = vmatprep.subr.bf16.mxu0 %v907
    %1301 = vmatpush2.bf16.msra.mxu0 %v906
    %1302 = vmatprep.mubr.bf16.mxu0 %v274
    %1303 = vmatmul.mubr.bf16.gmra.mxu0 %v273
    %v1304 = vpop.f32.mrf.mxu0
    %v1305 = vadd.f32 %v245, %v1304
    %v1306 = vpop.f32.mrf.mxu0
    %v1307 = vadd.f32 %v249, %v1306
    %v1308 = vpop.f32.mrf.mxu0
    %v1309 = vpop.f32.mrf.mxu0
    %1310 = vdwg.mxu0
    %1311 = vmatprep.subr.bf16.mxu0 %v967
    %1312 = vmatpush1.bf16.msra.mxu0 %v966
    %1313 = vmatprep.subr.bf16.mxu0 %v963
    %1314 = vmatpush1.bf16.msra.mxu0 %v962
    %1315 = vmatprep.subr.bf16.mxu0 %v959
    %1316 = vmatpush1.bf16.msra.mxu0 %v958
    %1317 = vmatprep.subr.bf16.mxu0 %v955
    %1318 = vmatpush1.bf16.msra.mxu0 %v954
    %1319 = vmatprep.subr.bf16.mxu0 %v951
    %1320 = vmatpush1.bf16.msra.mxu0 %v950
    %1321 = vmatprep.subr.bf16.mxu0 %v947
    %1322 = vmatpush1.bf16.msra.mxu0 %v946
    %1323 = vmatprep.subr.bf16.mxu0 %v943
    %1324 = vmatpush1.bf16.msra.mxu0 %v942
    %1325 = vmatprep.subr.bf16.mxu0 %v939
    %1326 = vmatpush1.bf16.msra.mxu0 %v938
    %1327 = vmatprep.subr.bf16.mxu0 %v999
    %1328 = vmatpush2.bf16.msra.mxu0 %v998
    %1329 = vmatprep.subr.bf16.mxu0 %v995
    %1330 = vmatpush2.bf16.msra.mxu0 %v994
    %1331 = vmatprep.subr.bf16.mxu0 %v991
    %1332 = vmatpush2.bf16.msra.mxu0 %v990
    %1333 = vmatprep.subr.bf16.mxu0 %v987
    %1334 = vmatpush2.bf16.msra.mxu0 %v986
    %1335 = vmatprep.subr.bf16.mxu0 %v983
    %1336 = vmatpush2.bf16.msra.mxu0 %v982
    %1337 = vmatprep.subr.bf16.mxu0 %v979
    %1338 = vmatpush2.bf16.msra.mxu0 %v978
    %1339 = vmatprep.subr.bf16.mxu0 %v975
    %1340 = vmatpush2.bf16.msra.mxu0 %v974
    %1341 = vmatprep.subr.bf16.mxu0 %v971
    %1342 = vmatpush2.bf16.msra.mxu0 %v970
    %1343 = vmatprep.mubr.bf16.mxu0 %v276
    %1344 = vmatmul.mubr.bf16.gmra.mxu0 %v275
    %v1345 = vpop.f32.mrf.mxu0
    %v1346 = vadd.f32 %v1305, %v1345
    %v1347 = vpop.f32.mrf.mxu0
    %v1348 = vadd.f32 %v1307, %v1347
    %v1349 = vpop.f32.mrf.mxu0
    %v1350 = vpop.f32.mrf.mxu0
    %1351 = vdwg.mxu0
    %1352 = vmatprep.subr.bf16.mxu0 %v1031
    %1353 = vmatpush1.bf16.msra.mxu0 %v1030
    %1354 = vmatprep.subr.bf16.mxu0 %v1027
    %1355 = vmatpush1.bf16.msra.mxu0 %v1026
    %1356 = vmatprep.subr.bf16.mxu0 %v1023
    %1357 = vmatpush1.bf16.msra.mxu0 %v1022
    %1358 = vmatprep.subr.bf16.mxu0 %v1019
    %1359 = vmatpush1.bf16.msra.mxu0 %v1018
    %1360 = vmatprep.subr.bf16.mxu0 %v1015
    %1361 = vmatpush1.bf16.msra.mxu0 %v1014
    %1362 = vmatprep.subr.bf16.mxu0 %v1011
    %1363 = vmatpush1.bf16.msra.mxu0 %v1010
    %1364 = vmatprep.subr.bf16.mxu0 %v1007
    %1365 = vmatpush1.bf16.msra.mxu0 %v1006
    %1366 = vmatprep.subr.bf16.mxu0 %v1003
    %1367 = vmatpush1.bf16.msra.mxu0 %v1002
    %1368 = vmatprep.subr.bf16.mxu0 %v1063
    %1369 = vmatpush2.bf16.msra.mxu0 %v1062
    %1370 = vmatprep.subr.bf16.mxu0 %v1059
    %1371 = vmatpush2.bf16.msra.mxu0 %v1058
    %1372 = vmatprep.subr.bf16.mxu0 %v1055
    %1373 = vmatpush2.bf16.msra.mxu0 %v1054
    %1374 = vmatprep.subr.bf16.mxu0 %v1051
    %1375 = vmatpush2.bf16.msra.mxu0 %v1050
    %1376 = vmatprep.subr.bf16.mxu0 %v1047
    %1377 = vmatpush2.bf16.msra.mxu0 %v1046
    %1378 = vmatprep.subr.bf16.mxu0 %v1043
    %1379 = vmatpush2.bf16.msra.mxu0 %v1042
    %1380 = vmatprep.subr.bf16.mxu0 %v1039
    %1381 = vmatpush2.bf16.msra.mxu0 %v1038
    %1382 = vmatprep.subr.bf16.mxu0 %v1035
    %1383 = vmatpush2.bf16.msra.mxu0 %v1034
    %1384 = vmatprep.mubr.bf16.mxu0 %v278
    %1385 = vmatmul.mubr.bf16.gmra.mxu0 %v277
    %v1386 = vpop.f32.mrf.mxu0
    %v1387 = vadd.f32 %v1346, %v1386
    %v1388 = vpop.f32.mrf.mxu0
    %v1389 = vadd.f32 %v1348, %v1388
    %v1390 = vpop.f32.mrf.mxu0
    %v1391 = vpop.f32.mrf.mxu0
    %1392 = vdwg.mxu0
    %1393 = vmatprep.subr.bf16.mxu0 0
    %1394 = vmatpush1.bf16.msra.mxu0 0
    %1395 = vmatprep.subr.bf16.mxu0 0
    %1396 = vmatpush1.bf16.msra.mxu0 0
    %1397 = vmatprep.subr.bf16.mxu0 0
    %1398 = vmatpush1.bf16.msra.mxu0 0
    %1399 = vmatprep.subr.bf16.mxu0 0
    %1400 = vmatpush1.bf16.msra.mxu0 0
    %1401 = vmatprep.subr.bf16.mxu0 0
    %1402 = vmatpush1.bf16.msra.mxu0 0
    %1403 = vmatprep.subr.bf16.mxu0 0
    %1404 = vmatpush1.bf16.msra.mxu0 0
    %1405 = vmatprep.subr.bf16.mxu0 0
    %1406 = vmatpush1.bf16.msra.mxu0 0
    %1407 = vmatprep.subr.bf16.mxu0 %v1067
    %1408 = vmatpush1.bf16.msra.mxu0 %v1066
    %1409 = vmatprep.subr.bf16.mxu0 0
    %1410 = vmatpush2.bf16.msra.mxu0 0
    %1411 = vmatprep.subr.bf16.mxu0 0
    %1412 = vmatpush2.bf16.msra.mxu0 0
    %1413 = vmatprep.subr.bf16.mxu0 0
    %1414 = vmatpush2.bf16.msra.mxu0 0
    %1415 = vmatprep.subr.bf16.mxu0 0
    %1416 = vmatpush2.bf16.msra.mxu0 0
    %1417 = vmatprep.subr.bf16.mxu0 0
    %1418 = vmatpush2.bf16.msra.mxu0 0
    %1419 = vmatprep.subr.bf16.mxu0 0
    %1420 = vmatpush2.bf16.msra.mxu0 0
    %1421 = vmatprep.subr.bf16.mxu0 0
    %1422 = vmatpush2.bf16.msra.mxu0 0
    %1423 = vmatprep.subr.bf16.mxu0 0
    %1424 = vmatpush2.bf16.msra.mxu0 0
    %1425 = vmatprep.mubr.bf16.mxu0 0
    %1426 = vmatmul.mubr.bf16.gmra.mxu0 %v1268
    %v1427 = vpop.f32.mrf.mxu0
    %v1428 = vadd.f32 %v1387, %v1427
    %v1429 = vpop.f32.mrf.mxu0
    %v1430 = vadd.f32 %v1389, %v1429
    %v1431 = vpop.f32.mrf.mxu0
    %v1432 = vpop.f32.mrf.mxu0
    %1433 = vdwg.mxu0
    %1434 = vmatprep.subr.bf16.mxu0 %v905
    %1435 = vmatpush1.bf16.msra.mxu0 %v904
    %1436 = vmatprep.subr.bf16.mxu0 %v901
    %1437 = vmatpush1.bf16.msra.mxu0 %v900
    %1438 = vmatprep.subr.bf16.mxu0 %v897
    %1439 = vmatpush1.bf16.msra.mxu0 %v896
    %1440 = vmatprep.subr.bf16.mxu0 %v893
    %1441 = vmatpush1.bf16.msra.mxu0 %v892
    %1442 = vmatprep.subr.bf16.mxu0 %v889
    %1443 = vmatpush1.bf16.msra.mxu0 %v888
    %1444 = vmatprep.subr.bf16.mxu0 %v885
    %1445 = vmatpush1.bf16.msra.mxu0 %v884
    %1446 = vmatprep.subr.bf16.mxu0 %v881
    %1447 = vmatpush1.bf16.msra.mxu0 %v880
    %1448 = vmatprep.subr.bf16.mxu0 %v877
    %1449 = vmatpush1.bf16.msra.mxu0 %v876
    %1450 = vmatprep.subr.bf16.mxu0 %v937
    %1451 = vmatpush2.bf16.msra.mxu0 %v936
    %1452 = vmatprep.subr.bf16.mxu0 %v933
    %1453 = vmatpush2.bf16.msra.mxu0 %v932
    %1454 = vmatprep.subr.bf16.mxu0 %v929
    %1455 = vmatpush2.bf16.msra.mxu0 %v928
    %1456 = vmatprep.subr.bf16.mxu0 %v925
    %1457 = vmatpush2.bf16.msra.mxu0 %v924
    %1458 = vmatprep.subr.bf16.mxu0 %v921
    %1459 = vmatpush2.bf16.msra.mxu0 %v920
    %1460 = vmatprep.subr.bf16.mxu0 %v917
    %1461 = vmatpush2.bf16.msra.mxu0 %v916
    %1462 = vmatprep.subr.bf16.mxu0 %v913
    %1463 = vmatpush2.bf16.msra.mxu0 %v912
    %1464 = vmatprep.subr.bf16.mxu0 %v909
    %1465 = vmatpush2.bf16.msra.mxu0 %v908
    %1466 = vmatprep.mubr.bf16.mxu0 %v274
    %1467 = vmatmul.mubr.bf16.gmra.mxu0 %v273
    %v1468 = vpop.f32.mrf.mxu0
    %v1469 = vadd.f32 %v253, %v1468
    %v1470 = vpop.f32.mrf.mxu0
    %v1471 = vadd.f32 %v257, %v1470
    %v1472 = vpop.f32.mrf.mxu0
    %v1473 = vpop.f32.mrf.mxu0
    %1474 = vdwg.mxu0
    %1475 = vmatprep.subr.bf16.mxu0 %v969
    %1476 = vmatpush1.bf16.msra.mxu0 %v968
    %1477 = vmatprep.subr.bf16.mxu0 %v965
    %1478 = vmatpush1.bf16.msra.mxu0 %v964
    %1479 = vmatprep.subr.bf16.mxu0 %v961
    %1480 = vmatpush1.bf16.msra.mxu0 %v960
    %1481 = vmatprep.subr.bf16.mxu0 %v957
    %1482 = vmatpush1.bf16.msra.mxu0 %v956
    %1483 = vmatprep.subr.bf16.mxu0 %v953
    %1484 = vmatpush1.bf16.msra.mxu0 %v952
    %1485 = vmatprep.subr.bf16.mxu0 %v949
    %1486 = vmatpush1.bf16.msra.mxu0 %v948
    %1487 = vmatprep.subr.bf16.mxu0 %v945
    %1488 = vmatpush1.bf16.msra.mxu0 %v944
    %1489 = vmatprep.subr.bf16.mxu0 %v941
    %1490 = vmatpush1.bf16.msra.mxu0 %v940
    %1491 = vmatprep.subr.bf16.mxu0 %v1001
    %1492 = vmatpush2.bf16.msra.mxu0 %v1000
    %1493 = vmatprep.subr.bf16.mxu0 %v997
    %1494 = vmatpush2.bf16.msra.mxu0 %v996
    %1495 = vmatprep.subr.bf16.mxu0 %v993
    %1496 = vmatpush2.bf16.msra.mxu0 %v992
    %1497 = vmatprep.subr.bf16.mxu0 %v989
    %1498 = vmatpush2.bf16.msra.mxu0 %v988
    %1499 = vmatprep.subr.bf16.mxu0 %v985
    %1500 = vmatpush2.bf16.msra.mxu0 %v984
    %1501 = vmatprep.subr.bf16.mxu0 %v981
    %1502 = vmatpush2.bf16.msra.mxu0 %v980
    %1503 = vmatprep.subr.bf16.mxu0 %v977
    %1504 = vmatpush2.bf16.msra.mxu0 %v976
    %1505 = vmatprep.subr.bf16.mxu0 %v973
    %1506 = vmatpush2.bf16.msra.mxu0 %v972
    %1507 = vmatprep.mubr.bf16.mxu0 %v276
    %1508 = vmatmul.mubr.bf16.gmra.mxu0 %v275
    %v1509 = vpop.f32.mrf.mxu0
    %v1510 = vadd.f32 %v1469, %v1509
    %v1511 = vpop.f32.mrf.mxu0
    %v1512 = vadd.f32 %v1471, %v1511
    %v1513 = vpop.f32.mrf.mxu0
    %v1514 = vpop.f32.mrf.mxu0
    %1515 = vdwg.mxu0
    %1516 = vmatprep.subr.bf16.mxu0 %v1033
    %1517 = vmatpush1.bf16.msra.mxu0 %v1032
    %1518 = vmatprep.subr.bf16.mxu0 %v1029
    %1519 = vmatpush1.bf16.msra.mxu0 %v1028
    %1520 = vmatprep.subr.bf16.mxu0 %v1025
    %1521 = vmatpush1.bf16.msra.mxu0 %v1024
    %1522 = vmatprep.subr.bf16.mxu0 %v1021
    %1523 = vmatpush1.bf16.msra.mxu0 %v1020
    %1524 = vmatprep.subr.bf16.mxu0 %v1017
    %1525 = vmatpush1.bf16.msra.mxu0 %v1016
    %1526 = vmatprep.subr.bf16.mxu0 %v1013
    %1527 = vmatpush1.bf16.msra.mxu0 %v1012
    %1528 = vmatprep.subr.bf16.mxu0 %v1009
    %1529 = vmatpush1.bf16.msra.mxu0 %v1008
    %1530 = vmatprep.subr.bf16.mxu0 %v1005
    %1531 = vmatpush1.bf16.msra.mxu0 %v1004
    %1532 = vmatprep.subr.bf16.mxu0 %v1065
    %1533 = vmatpush2.bf16.msra.mxu0 %v1064
    %1534 = vmatprep.subr.bf16.mxu0 %v1061
    %1535 = vmatpush2.bf16.msra.mxu0 %v1060
    %1536 = vmatprep.subr.bf16.mxu0 %v1057
    %1537 = vmatpush2.bf16.msra.mxu0 %v1056
    %1538 = vmatprep.subr.bf16.mxu0 %v1053
    %1539 = vmatpush2.bf16.msra.mxu0 %v1052
    %1540 = vmatprep.subr.bf16.mxu0 %v1049
    %1541 = vmatpush2.bf16.msra.mxu0 %v1048
    %1542 = vmatprep.subr.bf16.mxu0 %v1045
    %1543 = vmatpush2.bf16.msra.mxu0 %v1044
    %1544 = vmatprep.subr.bf16.mxu0 %v1041
    %1545 = vmatpush2.bf16.msra.mxu0 %v1040
    %1546 = vmatprep.subr.bf16.mxu0 %v1037
    %1547 = vmatpush2.bf16.msra.mxu0 %v1036
    %1548 = vmatprep.mubr.bf16.mxu0 %v278
    %1549 = vmatmul.mubr.bf16.gmra.mxu0 %v277
    %v1550 = vpop.f32.mrf.mxu0
    %v1551 = vadd.f32 %v1510, %v1550
    %v1552 = vpop.f32.mrf.mxu0
    %v1553 = vadd.f32 %v1512, %v1552
    %v1554 = vpop.f32.mrf.mxu0
    %v1555 = vpop.f32.mrf.mxu0
    %1556 = vdwg.mxu0
    %1557 = vmatprep.subr.bf16.mxu0 0
    %1558 = vmatpush1.bf16.msra.mxu0 0
    %1559 = vmatprep.subr.bf16.mxu0 0
    %1560 = vmatpush1.bf16.msra.mxu0 0
    %1561 = vmatprep.subr.bf16.mxu0 0
    %1562 = vmatpush1.bf16.msra.mxu0 0
    %1563 = vmatprep.subr.bf16.mxu0 0
    %1564 = vmatpush1.bf16.msra.mxu0 0
    %1565 = vmatprep.subr.bf16.mxu0 0
    %1566 = vmatpush1.bf16.msra.mxu0 0
    %1567 = vmatprep.subr.bf16.mxu0 0
    %1568 = vmatpush1.bf16.msra.mxu0 0
    %1569 = vmatprep.subr.bf16.mxu0 0
    %1570 = vmatpush1.bf16.msra.mxu0 0
    %1571 = vmatprep.subr.bf16.mxu0 %v1069
    %1572 = vmatpush1.bf16.msra.mxu0 %v1068
    %1573 = vmatprep.subr.bf16.mxu0 0
    %1574 = vmatpush2.bf16.msra.mxu0 0
    %1575 = vmatprep.subr.bf16.mxu0 0
    %1576 = vmatpush2.bf16.msra.mxu0 0
    %1577 = vmatprep.subr.bf16.mxu0 0
    %1578 = vmatpush2.bf16.msra.mxu0 0
    %1579 = vmatprep.subr.bf16.mxu0 0
    %1580 = vmatpush2.bf16.msra.mxu0 0
    %1581 = vmatprep.subr.bf16.mxu0 0
    %1582 = vmatpush2.bf16.msra.mxu0 0
    %1583 = vmatprep.subr.bf16.mxu0 0
    %1584 = vmatpush2.bf16.msra.mxu0 0
    %1585 = vmatprep.subr.bf16.mxu0 0
    %1586 = vmatpush2.bf16.msra.mxu0 0
    %1587 = vmatprep.subr.bf16.mxu0 0
    %1588 = vmatpush2.bf16.msra.mxu0 0
    %1589 = vmatprep.mubr.bf16.mxu0 0
    %1590 = vmatmul.mubr.bf16.gmra.mxu0 %v1268
    %v1591 = vpop.f32.mrf.mxu0
    %v1592 = vadd.f32 %v1551, %v1591
    %v1593 = vpop.f32.mrf.mxu0
    %v1594 = vadd.f32 %v1553, %v1593
    %v1595 = vpop.f32.mrf.mxu0
    %v1596 = vpop.f32.mrf.mxu0
    %1597 = vdwg.mxu0
    %v1598 = vmax.f32 %v1428, 0.0
    %v1599 = vmax.f32 %v1430, 0.0
    %v1600 = vmax.f32 %v1592, 0.0
    %v1601 = vmax.f32 %v1594, 0.0
    %v1602 = vpack.c.bf16 %v1598, %v1598
    %v1603 = vpack.c.bf16 %v1599, %v1599
    %v1604 = vpack.c.bf16 %v1600, %v1600
    %v1605 = vpack.c.bf16 %v1601, %v1601
    %v1606 = vld [vmem:[%s4] sm:$0xf]
    %v1607 = vld [vmem:[%s4 + $0x4] sm:$0xf]
    %v1608 = vld [vmem:[%s4 + $0x8] sm:$0xf]
    %v1609 = vld [vmem:[%s4 + $0xc] sm:$0xf]
    %v1610 = vld [vmem:[%s4 + $0x10] sm:$0xf]
    %v1611 = vld [vmem:[%s4 + $0x14] sm:$0xf]
    %v1612 = vld [vmem:[%s4 + $0x18] sm:$0xf]
    %v1613 = vld [vmem:[%s4 + $0x1c] sm:$0xf]
    %v1614 = vld [vmem:[%s4 + $0x20] sm:$0xf]
    %v1615 = vld [vmem:[%s4 + $0x24] sm:$0xf]
    %v1616 = vld [vmem:[%s4 + $0x28] sm:$0xf]
    %v1617 = vld [vmem:[%s4 + $0x2c] sm:$0xf]
    %v1618 = vld [vmem:[%s4 + $0x30] sm:$0xf]
    %v1619 = vld [vmem:[%s4 + $0x34] sm:$0xf]
    %v1620 = vld [vmem:[%s4 + $0x38] sm:$0xf]
    %v1621 = vld [vmem:[%s4 + $0x3c] sm:$0xf]
    %v1622 = vld [vmem:[%s4 + $0x40] sm:$0xf]
    %v1623 = vld [vmem:[%s4 + $0x44] sm:$0xf]
    %v1624 = vld [vmem:[%s4 + $0x48] sm:$0xf]
    %v1625 = vld [vmem:[%s4 + $0x4c] sm:$0xf]
    %v1626 = vld [vmem:[%s4 + $0x50] sm:$0xf]
    %v1627 = vld [vmem:[%s4 + $0x54] sm:$0xf]
    %v1628 = vld [vmem:[%s4 + $0x58] sm:$0xf]
    %v1629 = vld [vmem:[%s4 + $0x5c] sm:$0xf]
    %v1630 = vld [vmem:[%s4 + $0x60] sm:$0xf]
    %v1631 = vld [vmem:[%s4 + $0x64] sm:$0xf]
    %v1632 = vld [vmem:[%s4 + $0x68] sm:$0xf]
    %v1633 = vld [vmem:[%s4 + $0x6c] sm:$0xf]
    %v1634 = vld [vmem:[%s4 + $0x70] sm:$0xf]
    %v1635 = vld [vmem:[%s4 + $0x74] sm:$0xf]
    %v1636 = vld [vmem:[%s4 + $0x78] sm:$0xf]
    %v1637 = vld [vmem:[%s4 + $0x7c] sm:$0xf]
    %v1638 = vld [vmem:[%s4 + $0x80] sm:$0xf]
    %v1639 = vld [vmem:[%s4 + $0x84] sm:$0xf]
    %v1640 = vld [vmem:[%s4 + $0x88] sm:$0xf]
    %v1641 = vld [vmem:[%s4 + $0x8c] sm:$0xf]
    %v1642 = vld [vmem:[%s4 + $0x90] sm:$0xf]
    %v1643 = vld [vmem:[%s4 + $0x94] sm:$0xf]
    %v1644 = vld [vmem:[%s4 + $0x98] sm:$0xf]
    %v1645 = vld [vmem:[%s4 + $0x9c] sm:$0xf]
    %v1646 = vld [vmem:[%s4 + $0xa0] sm:$0xf]
    %v1647 = vld [vmem:[%s4 + $0xa4] sm:$0xf]
    %v1648 = vld [vmem:[%s4 + $0xa8] sm:$0xf]
    %v1649 = vld [vmem:[%s4 + $0xac] sm:$0xf]
    %v1650 = vld [vmem:[%s4 + $0xb0] sm:$0xf]
    %v1651 = vld [vmem:[%s4 + $0xb4] sm:$0xf]
    %v1652 = vld [vmem:[%s4 + $0xb8] sm:$0xf]
    %v1653 = vld [vmem:[%s4 + $0xbc] sm:$0xf]
    %v1654 = vld [vmem:[%s4 + $0xc0] sm:$0xf]
    %v1655 = vld [vmem:[%s4 + $0xc4] sm:$0xf]
    %v1656 = vld [vmem:[%s5] sm:$0x1]
    %v1658 = vlaneseq
    %v1659 = vshrl.u32 %v1658, 7
    %v1660 = vsub.s32 0, %v1659
    %v1661 = vrot.slane %v1656, %v1660
    %v1713 = vunpack.c.l.b16 %v1606
    %v1714 = vunpack.c.l.b16 %v1607
    %v1715 = vunpack.c.l.b16 %v1608
    %v1716 = vunpack.c.l.b16 %v1609
    %v1717 = vunpack.c.l.b16 %v1610
    %v1718 = vunpack.c.l.b16 %v1611
    %v1719 = vunpack.c.l.b16 %v1612
    %v1720 = vunpack.c.l.b16 %v1613
    %v1721 = vunpack.c.l.b16 %v1614
    %v1722 = vunpack.c.l.b16 %v1615
    %v1723 = vunpack.c.l.b16 %v1616
    %v1724 = vunpack.c.l.b16 %v1617
    %v1725 = vunpack.c.l.b16 %v1618
    %v1726 = vunpack.c.l.b16 %v1619
    %v1727 = vunpack.c.l.b16 %v1620
    %v1728 = vunpack.c.l.b16 %v1621
    %v1729 = vunpack.c.l.b16 %v1622
    %v1730 = vunpack.c.l.b16 %v1623
    %v1731 = vunpack.c.l.b16 %v1624
    %v1732 = vunpack.c.l.b16 %v1625
    %v1733 = vunpack.c.l.b16 %v1626
    %v1734 = vunpack.c.l.b16 %v1627
    %v1735 = vunpack.c.l.b16 %v1628
    %v1736 = vunpack.c.l.b16 %v1629
    %v1737 = vunpack.c.l.b16 %v1630
    %v1738 = vunpack.c.l.b16 %v1631
    %v1739 = vunpack.c.l.b16 %v1632
    %v1740 = vunpack.c.l.b16 %v1633
    %v1741 = vunpack.c.l.b16 %v1634
    %v1742 = vunpack.c.l.b16 %v1635
    %v1743 = vunpack.c.l.b16 %v1636
    %v1744 = vunpack.c.l.b16 %v1637
    %v1745 = vunpack.c.l.b16 %v1638
    %v1746 = vunpack.c.l.b16 %v1639
    %v1747 = vunpack.c.l.b16 %v1640
    %v1748 = vunpack.c.l.b16 %v1641
    %v1749 = vunpack.c.l.b16 %v1642
    %v1750 = vunpack.c.l.b16 %v1643
    %v1751 = vunpack.c.l.b16 %v1644
    %v1752 = vunpack.c.l.b16 %v1645
    %v1753 = vunpack.c.l.b16 %v1646
    %v1754 = vunpack.c.l.b16 %v1647
    %v1755 = vunpack.c.l.b16 %v1648
    %v1756 = vunpack.c.l.b16 %v1649
    %v1757 = vunpack.c.l.b16 %v1650
    %v1758 = vunpack.c.l.b16 %v1651
    %v1759 = vunpack.c.l.b16 %v1652
    %v1760 = vunpack.c.l.b16 %v1653
    %v1761 = vunpack.c.l.b16 %v1654
    %v1762 = vunpack.c.l.b16 %v1655
    %v1763 = vpack.c.b16 %v1714, %v1713
    %v1764 = vpack.c.b16 %v1716, %v1715
    %v1765 = vpack.c.b16 %v1718, %v1717
    %v1766 = vpack.c.b16 %v1720, %v1719
    %v1767 = vpack.c.b16 %v1722, %v1721
    %v1768 = vpack.c.b16 %v1724, %v1723
    %v1769 = vpack.c.b16 %v1726, %v1725
    %v1770 = vpack.c.b16 %v1728, %v1727
    %v1771 = vpack.c.b16 %v1730, %v1729
    %v1772 = vpack.c.b16 %v1732, %v1731
    %v1773 = vpack.c.b16 %v1734, %v1733
    %v1774 = vpack.c.b16 %v1736, %v1735
    %v1775 = vpack.c.b16 %v1738, %v1737
    %v1776 = vpack.c.b16 %v1740, %v1739
    %v1777 = vpack.c.b16 %v1742, %v1741
    %v1778 = vpack.c.b16 %v1744, %v1743
    %v1779 = vpack.c.b16 %v1746, %v1745
    %v1780 = vpack.c.b16 %v1748, %v1747
    %v1781 = vpack.c.b16 %v1750, %v1749
    %v1782 = vpack.c.b16 %v1752, %v1751
    %v1783 = vpack.c.b16 %v1754, %v1753
    %v1784 = vpack.c.b16 %v1756, %v1755
    %v1785 = vpack.c.b16 %v1758, %v1757
    %v1786 = vpack.c.b16 %v1760, %v1759
    %v1787 = vpack.c.b16 %v1762, %v1761
    %v1814 = vsel %vm1266, %v1605, 0
    %1816 = vmatprep.subr.bf16.mxu0 0
    %1817 = vmatpush1.bf16.msra.mxu0 %v1770
    %1818 = vmatprep.subr.bf16.mxu0 0
    %1819 = vmatpush1.bf16.msra.mxu0 %v1769
    %1820 = vmatprep.subr.bf16.mxu0 0
    %1821 = vmatpush1.bf16.msra.mxu0 %v1768
    %1822 = vmatprep.subr.bf16.mxu0 0
    %1823 = vmatpush1.bf16.msra.mxu0 %v1767
    %1824 = vmatprep.subr.bf16.mxu0 0
    %1825 = vmatpush1.bf16.msra.mxu0 %v1766
    %1826 = vmatprep.subr.bf16.mxu0 0
    %1827 = vmatpush1.bf16.msra.mxu0 %v1765
    %1828 = vmatprep.subr.bf16.mxu0 0
    %1829 = vmatpush1.bf16.msra.mxu0 %v1764
    %1830 = vmatprep.subr.bf16.mxu0 0
    %1831 = vmatpush1.bf16.msra.mxu0 %v1763
    %1832 = vmatprep.subr.bf16.mxu0 0
    %1833 = vmatpush2.bf16.msra.mxu0 %v1778
    %1834 = vmatprep.subr.bf16.mxu0 0
    %1835 = vmatpush2.bf16.msra.mxu0 %v1777
    %1836 = vmatprep.subr.bf16.mxu0 0
    %1837 = vmatpush2.bf16.msra.mxu0 %v1776
    %1838 = vmatprep.subr.bf16.mxu0 0
    %1839 = vmatpush2.bf16.msra.mxu0 %v1775
    %1840 = vmatprep.subr.bf16.mxu0 0
    %1841 = vmatpush2.bf16.msra.mxu0 %v1774
    %1842 = vmatprep.subr.bf16.mxu0 0
    %1843 = vmatpush2.bf16.msra.mxu0 %v1773
    %1844 = vmatprep.subr.bf16.mxu0 0
    %1845 = vmatpush2.bf16.msra.mxu0 %v1772
    %1846 = vmatprep.subr.bf16.mxu0 0
    %1847 = vmatpush2.bf16.msra.mxu0 %v1771
    %1848 = vmatprep.mubr.bf16.mxu0 %v1603
    %1849 = vmatmul.mubr.bf16.gmra.mxu0 %v1602
    %v1850 = vpop.f32.mrf.mxu0
    %v1851 = vadd.f32 %v1661, %v1850
    %v1852 = vpop.f32.mrf.mxu0
    %v1853 = vpop.f32.mrf.mxu0
    %v1854 = vpop.f32.mrf.mxu0
    %1855 = vdwg.mxu0
    %1856 = vmatprep.subr.bf16.mxu0 0
    %1857 = vmatpush1.bf16.msra.mxu0 %v1786
    %1858 = vmatprep.subr.bf16.mxu0 0
    %1859 = vmatpush1.bf16.msra.mxu0 %v1785
    %1860 = vmatprep.subr.bf16.mxu0 0
    %1861 = vmatpush1.bf16.msra.mxu0 %v1784
    %1862 = vmatprep.subr.bf16.mxu0 0
    %1863 = vmatpush1.bf16.msra.mxu0 %v1783
    %1864 = vmatprep.subr.bf16.mxu0 0
    %1865 = vmatpush1.bf16.msra.mxu0 %v1782
    %1866 = vmatprep.subr.bf16.mxu0 0
    %1867 = vmatpush1.bf16.msra.mxu0 %v1781
    %1868 = vmatprep.subr.bf16.mxu0 0
    %1869 = vmatpush1.bf16.msra.mxu0 %v1780
    %1870 = vmatprep.subr.bf16.mxu0 0
    %1871 = vmatpush1.bf16.msra.mxu0 %v1779
    %1872 = vmatprep.subr.bf16.mxu0 0
    %1873 = vmatpush2.bf16.msra.mxu0 0
    %1874 = vmatprep.subr.bf16.mxu0 0
    %1875 = vmatpush2.bf16.msra.mxu0 0
    %1876 = vmatprep.subr.bf16.mxu0 0
    %1877 = vmatpush2.bf16.msra.mxu0 0
    %1878 = vmatprep.subr.bf16.mxu0 0
    %1879 = vmatpush2.bf16.msra.mxu0 0
    %1880 = vmatprep.subr.bf16.mxu0 0
    %1881 = vmatpush2.bf16.msra.mxu0 0
    %1882 = vmatprep.subr.bf16.mxu0 0
    %1883 = vmatpush2.bf16.msra.mxu0 0
    %1884 = vmatprep.subr.bf16.mxu0 0
    %1885 = vmatpush2.bf16.msra.mxu0 0
    %1886 = vmatprep.subr.bf16.mxu0 0
    %1887 = vmatpush2.bf16.msra.mxu0 %v1787
    %1888 = vmatprep.mubr.bf16.mxu0 %v1814
    %1889 = vmatmul.mubr.bf16.gmra.mxu0 %v1604
    %v1890 = vpop.f32.mrf.mxu0
    %v1891 = vadd.f32 %v1851, %v1890
    %v1892 = vpop.f32.mrf.mxu0
    %v1893 = vpop.f32.mrf.mxu0
    %v1894 = vpop.f32.mrf.mxu0
    %1895 = vdwg.mxu0
    %v1896 = vmul.f32 %v1891, 0.5
    %v1897 = vmul.f32 %v1896, 1.442695
    %v1898 = vpow.pop %v1897
    %1900 = vrot.lane.b32.xlu0 %v1898, 108
    %v1901 = vpop.permute.xlu0 %1900
    %v1903 = vmul.f32 %v43, %v1901
    %v1904 = vadd.f32 %v1903, %v1891
    %v1905 = vpack.c.bf16 %v1904, %v1904
    %v1906 = vld [vmem:[%s6] sm:$0xff]
    %v1907 = vld [vmem:[%s6 + $0x8] sm:$0xff]
    %v1908 = vld [vmem:[%s6 + $0x10] sm:$0xff]
    %v1909 = vld [vmem:[%s6 + $0x18] sm:$0xff]
    %v1910 = vld [vmem:[%s6 + $0x20] sm:$0x33]
    %v1911 = vld [vmem:[%s6 + $0x28] sm:$0x33]
    %v1912 = vld [vmem:[%s7] sm:$0xf]
    %v1914 = vlaneseq
    %v1915 = vshrl.u32 %v1914, 7
    %v1916 = vsub.s32 0, %v1915
    %v1917 = vrot.slane %v1912, %v1916
    %v1918 = vlaneseq
    %v1919 = vshrl.u32 %v1918, 7
    %v1920 = vsub.s32 1, %v1919
    %v1921 = vrot.slane %v1912, %v1920
    %v1922 = vlaneseq
    %v1923 = vshrl.u32 %v1922, 7
    %v1924 = vsub.s32 2, %v1923
    %v1925 = vrot.slane %v1912, %v1924
    %v1926 = vlaneseq
    %v1927 = vshrl.u32 %v1926, 7
    %v1928 = vsub.s32 3, %v1927
    %v1929 = vrot.slane %v1912, %v1928
    %v1940 = vunpack.c.l.b16 %v1906
    %v1941 = vunpack.c.h.b16 %v1906
    %v1942 = vunpack.c.l.b16 %v1907
    %v1943 = vunpack.c.h.b16 %v1907
    %v1944 = vunpack.c.l.b16 %v1908
    %v1945 = vunpack.c.h.b16 %v1908
    %v1946 = vunpack.c.l.b16 %v1909
    %v1947 = vunpack.c.h.b16 %v1909
    %v1948 = vunpack.c.l.b16 %v1910
    %v1949 = vunpack.c.h.b16 %v1910
    %v1950 = vunpack.c.l.b16 %v1911
    %v1951 = vunpack.c.h.b16 %v1911
    %v1952 = vpack.c.b16 %v1944, %v1940
    %v1953 = vpack.c.b16 %v1945, %v1941
    %v1954 = vpack.c.b16 %v1946, %v1942
    %v1955 = vpack.c.b16 %v1947, %v1943
    %v1956 = vpack.c.b16 %v1948, %v1948
    %v1957 = vpack.c.b16 %v1949, %v1949
    %v1958 = vpack.c.b16 %v1950, %v1950
    %v1959 = vpack.c.b16 %v1951, %v1951
    %vm1964 = vcmask 162816
    %v1966 = vsel %vm1964, %v1905, 0
    %vm1968 = vcmask 1041408
    %v1970 = vsel %vm1968, %v1956, 0
    %v1973 = vsel %vm1968, %v1957, 0
    %v1976 = vsel %vm1968, %v1958, 0
    %v1979 = vsel %vm1968, %v1959, 0
    %1981 = vmatprep.subr.bf16.mxu0 0
    %1982 = vmatpush1.bf16.msra.mxu0 0
    %1983 = vmatprep.subr.bf16.mxu0 0
    %1984 = vmatpush1.bf16.msra.mxu0 0
    %1985 = vmatprep.subr.bf16.mxu0 0
    %1986 = vmatpush1.bf16.msra.mxu0 0
    %1987 = vmatprep.subr.bf16.mxu0 0
    %1988 = vmatpush1.bf16.msra.mxu0 0
    %1989 = vmatprep.subr.bf16.mxu0 0
    %1990 = vmatpush1.bf16.msra.mxu0 0
    %1991 = vmatprep.subr.bf16.mxu0 0
    %1992 = vmatpush1.bf16.msra.mxu0 0
    %1993 = vmatprep.subr.bf16.mxu0 %v1973
    %1994 = vmatpush1.bf16.msra.mxu0 %v1970
    %1995 = vmatprep.subr.bf16.mxu0 %v1953
    %1996 = vmatpush1.bf16.msra.mxu0 %v1952
    %1997 = vmatprep.subr.bf16.mxu0 0
    %1998 = vmatpush2.bf16.msra.mxu0 0
    %1999 = vmatprep.subr.bf16.mxu0 0
    %2000 = vmatpush2.bf16.msra.mxu0 0
    %2001 = vmatprep.subr.bf16.mxu0 0
    %2002 = vmatpush2.bf16.msra.mxu0 0
    %2003 = vmatprep.subr.bf16.mxu0 0
    %2004 = vmatpush2.bf16.msra.mxu0 0
    %2005 = vmatprep.subr.bf16.mxu0 0
    %2006 = vmatpush2.bf16.msra.mxu0 0
    %2007 = vmatprep.subr.bf16.mxu0 0
    %2008 = vmatpush2.bf16.msra.mxu0 0
    %2009 = vmatprep.subr.bf16.mxu0 0
    %2010 = vmatpush2.bf16.msra.mxu0 0
    %2011 = vmatprep.subr.bf16.mxu0 0
    %2012 = vmatpush2.bf16.msra.mxu0 0
    %2013 = vmatprep.mubr.bf16.mxu0 0
    %2014 = vmatmul.mubr.bf16.gmra.mxu0 %v1966
    %v2015 = vpop.f32.mrf.mxu0
    %v2016 = vadd.f32 %v1917, %v2015
    %v2017 = vpop.f32.mrf.mxu0
    %v2018 = vadd.f32 %v1921, %v2017
    %v2019 = vpop.f32.mrf.mxu0
    %v2020 = vpop.f32.mrf.mxu0
    %2021 = vdwg.mxu0
    %2022 = vmatprep.subr.bf16.mxu0 0
    %2023 = vmatpush1.bf16.msra.mxu0 0
    %2024 = vmatprep.subr.bf16.mxu0 0
    %2025 = vmatpush1.bf16.msra.mxu0 0
    %2026 = vmatprep.subr.bf16.mxu0 0
    %2027 = vmatpush1.bf16.msra.mxu0 0
    %2028 = vmatprep.subr.bf16.mxu0 0
    %2029 = vmatpush1.bf16.msra.mxu0 0
    %2030 = vmatprep.subr.bf16.mxu0 0
    %2031 = vmatpush1.bf16.msra.mxu0 0
    %2032 = vmatprep.subr.bf16.mxu0 0
    %2033 = vmatpush1.bf16.msra.mxu0 0
    %2034 = vmatprep.subr.bf16.mxu0 %v1979
    %2035 = vmatpush1.bf16.msra.mxu0 %v1976
    %2036 = vmatprep.subr.bf16.mxu0 %v1955
    %2037 = vmatpush1.bf16.msra.mxu0 %v1954
    %2038 = vmatprep.subr.bf16.mxu0 0
    %2039 = vmatpush2.bf16.msra.mxu0 0
    %2040 = vmatprep.subr.bf16.mxu0 0
    %2041 = vmatpush2.bf16.msra.mxu0 0
    %2042 = vmatprep.subr.bf16.mxu0 0
    %2043 = vmatpush2.bf16.msra.mxu0 0
    %2044 = vmatprep.subr.bf16.mxu0 0
    %2045 = vmatpush2.bf16.msra.mxu0 0
    %2046 = vmatprep.subr.bf16.mxu0 0
    %2047 = vmatpush2.bf16.msra.mxu0 0
    %2048 = vmatprep.subr.bf16.mxu0 0
    %2049 = vmatpush2.bf16.msra.mxu0 0
    %2050 = vmatprep.subr.bf16.mxu0 0
    %2051 = vmatpush2.bf16.msra.mxu0 0
    %2052 = vmatprep.subr.bf16.mxu0 0
    %2053 = vmatpush2.bf16.msra.mxu0 0
    %2054 = vmatprep.mubr.bf16.mxu0 0
    %2055 = vmatmul.mubr.bf16.gmra.mxu0 %v1966
    %v2056 = vpop.f32.mrf.mxu0
    %v2057 = vadd.f32 %v1925, %v2056
    %v2058 = vpop.f32.mrf.mxu0
    %v2059 = vadd.f32 %v1929, %v2058
    %v2060 = vpop.f32.mrf.mxu0
    %v2061 = vpop.f32.mrf.mxu0
    %2062 = vdwg.mxu0
    %v2063 = vmax.f32 %v2016, 0.0
    %v2064 = vmax.f32 %v2018, 0.0
    %v2065 = vmax.f32 %v2057, 0.0
    %v2066 = vmax.f32 %v2059, 0.0
    %v2067 = vpack.c.bf16 %v2063, %v2063
    %v2068 = vpack.c.bf16 %v2064, %v2064
    %v2069 = vpack.c.bf16 %v2065, %v2065
    %v2070 = vpack.c.bf16 %v2066, %v2066
    %v2071 = vld [vmem:[%s8] sm:$0xff]
    %v2072 = vld [vmem:[%s8 + $0x8] sm:$0xff]
    %v2073 = vld [vmem:[%s8 + $0x10] sm:$0xff]
    %v2074 = vld [vmem:[%s8 + $0x18] sm:$0xf]
    %v2075 = vld [vmem:[%s8 + $0x1c] sm:$0xff]
    %v2076 = vld [vmem:[%s8 + $0x24] sm:$0xff]
    %v2077 = vld [vmem:[%s8 + $0x2c] sm:$0xff]
    %v2078 = vld [vmem:[%s8 + $0x34] sm:$0xf]
    %v2079 = vld [vmem:[%s8 + $0x38] sm:$0xff]
    %v2080 = vld [vmem:[%s8 + $0x40] sm:$0xff]
    %v2081 = vld [vmem:[%s8 + $0x48] sm:$0xff]
    %v2082 = vld [vmem:[%s8 + $0x50] sm:$0xf]
    %v2083 = vld [vmem:[%s8 + $0x54] sm:$0xff]
    %v2084 = vld [vmem:[%s8 + $0x5c] sm:$0xff]
    %v2085 = vld [vmem:[%s8 + $0x64] sm:$0xff]
    %v2086 = vld [vmem:[%s8 + $0x6c] sm:$0xf]
    %v2087 = vld [vmem:[%s8 + $0x70] sm:$0xff]
    %v2088 = vld [vmem:[%s8 + $0x78] sm:$0xff]
    %v2089 = vld [vmem:[%s8 + $0x80] sm:$0xff]
    %v2090 = vld [vmem:[%s8 + $0x88] sm:$0xf]
    %v2091 = vld [vmem:[%s8 + $0x8c] sm:$0xff]
    %v2092 = vld [vmem:[%s8 + $0x94] sm:$0xff]
    %v2093 = vld [vmem:[%s8 + $0x9c] sm:$0xff]
    %v2094 = vld [vmem:[%s8 + $0xa4] sm:$0xf]
    %v2095 = vld [vmem:[%s8 + $0xa8] sm:$0xff]
    %v2096 = vld [vmem:[%s8 + $0xb0] sm:$0xff]
    %v2097 = vld [vmem:[%s8 + $0xb8] sm:$0xff]
    %v2098 = vld [vmem:[%s8 + $0xc0] sm:$0xf]
    %v2099 = vld [vmem:[%s8 + $0xc4] sm:$0xff]
    %v2100 = vld [vmem:[%s8 + $0xcc] sm:$0xff]
    %v2101 = vld [vmem:[%s8 + $0xd4] sm:$0xff]
    %v2102 = vld [vmem:[%s8 + $0xdc] sm:$0xf]
    %v2103 = vld [vmem:[%s8 + $0xe0] sm:$0xff]
    %v2104 = vld [vmem:[%s8 + $0xe8] sm:$0xff]
    %v2105 = vld [vmem:[%s8 + $0xf0] sm:$0xff]
    %v2106 = vld [vmem:[%s8 + $0xf8] sm:$0xf]
    %v2107 = vld [vmem:[%s8 + $0xfc] sm:$0xff]
    %v2108 = vld [vmem:[%s8 + $0x104] sm:$0xff]
    %v2109 = vld [vmem:[%s8 + $0x10c] sm:$0xff]
    %v2110 = vld [vmem:[%s8 + $0x114] sm:$0xf]
    %v2111 = vld [vmem:[%s8 + $0x118] sm:$0xff]
    %v2112 = vld [vmem:[%s8 + $0x120] sm:$0xff]
    %v2113 = vld [vmem:[%s8 + $0x128] sm:$0xff]
    %v2114 = vld [vmem:[%s8 + $0x130] sm:$0xf]
    %v2115 = vld [vmem:[%s8 + $0x134] sm:$0xff]
    %v2116 = vld [vmem:[%s8 + $0x13c] sm:$0xff]
    %v2117 = vld [vmem:[%s8 + $0x144] sm:$0xff]
    %v2118 = vld [vmem:[%s8 + $0x14c] sm:$0xf]
    %v2119 = vld [vmem:[%s8 + $0x150] sm:$0xff]
    %v2120 = vld [vmem:[%s8 + $0x158] sm:$0xff]
    %v2121 = vld [vmem:[%s8 + $0x160] sm:$0xff]
    %v2122 = vld [vmem:[%s8 + $0x168] sm:$0xf]
    %v2123 = vld [vmem:[%s8 + $0x16c] sm:$0xff]
    %v2124 = vld [vmem:[%s8 + $0x174] sm:$0xff]
    %v2125 = vld [vmem:[%s8 + $0x17c] sm:$0xff]
    %v2126 = vld [vmem:[%s8 + $0x184] sm:$0xf]
    %v2127 = vld [vmem:[%s8 + $0x188] sm:$0xff]
    %v2128 = vld [vmem:[%s8 + $0x190] sm:$0xff]
    %v2129 = vld [vmem:[%s8 + $0x198] sm:$0xff]
    %v2130 = vld [vmem:[%s8 + $0x1a0] sm:$0xf]
    %v2131 = vld [vmem:[%s8 + $0x1a4] sm:$0xff]
    %v2132 = vld [vmem:[%s8 + $0x1ac] sm:$0xff]
    %v2133 = vld [vmem:[%s8 + $0x1b4] sm:$0xff]
    %v2134 = vld [vmem:[%s8 + $0x1bc] sm:$0xf]
    %v2135 = vld [vmem:[%s8 + $0x1c0] sm:$0xff]
    %v2136 = vld [vmem:[%s8 + $0x1c8] sm:$0xff]
    %v2137 = vld [vmem:[%s8 + $0x1d0] sm:$0xff]
    %v2138 = vld [vmem:[%s8 + $0x1d8] sm:$0xf]
    %v2139 = vld [vmem:[%s8 + $0x1dc] sm:$0xff]
    %v2140 = vld [vmem:[%s8 + $0x1e4] sm:$0xff]
    %v2141 = vld [vmem:[%s8 + $0x1ec] sm:$0xff]
    %v2142 = vld [vmem:[%s8 + $0x1f4] sm:$0xf]
    %v2143 = vld [vmem:[%s8 + $0x1f8] sm:$0xff]
    %v2144 = vld [vmem:[%s8 + $0x200] sm:$0xff]
    %v2145 = vld [vmem:[%s8 + $0x208] sm:$0xff]
    %v2146 = vld [vmem:[%s8 + $0x210] sm:$0xf]
    %v2147 = vld [vmem:[%s8 + $0x214] sm:$0xff]
    %v2148 = vld [vmem:[%s8 + $0x21c] sm:$0xff]
    %v2149 = vld [vmem:[%s8 + $0x224] sm:$0xff]
    %v2150 = vld [vmem:[%s8 + $0x22c] sm:$0xf]
    %v2151 = vld [vmem:[%s8 + $0x230] sm:$0xff]
    %v2152 = vld [vmem:[%s8 + $0x238] sm:$0xff]
    %v2153 = vld [vmem:[%s8 + $0x240] sm:$0xff]
    %v2154 = vld [vmem:[%s8 + $0x248] sm:$0xf]
    %v2155 = vld [vmem:[%s8 + $0x24c] sm:$0xff]
    %v2156 = vld [vmem:[%s8 + $0x254] sm:$0xff]
    %v2157 = vld [vmem:[%s8 + $0x25c] sm:$0xff]
    %v2158 = vld [vmem:[%s8 + $0x264] sm:$0xf]
    %v2159 = vld [vmem:[%s8 + $0x268] sm:$0xff]
    %v2160 = vld [vmem:[%s8 + $0x270] sm:$0xff]
    %v2161 = vld [vmem:[%s8 + $0x278] sm:$0xff]
    %v2162 = vld [vmem:[%s8 + $0x280] sm:$0xf]
    %v2163 = vld [vmem:[%s8 + $0x284] sm:$0xff]
    %v2164 = vld [vmem:[%s8 + $0x28c] sm:$0xff]
    %v2165 = vld [vmem:[%s8 + $0x294] sm:$0xff]
    %v2166 = vld [vmem:[%s8 + $0x29c] sm:$0xf]
    %v2167 = vld [vmem:[%s8 + $0x2a0] sm:$0xff]
    %v2168 = vld [vmem:[%s8 + $0x2a8] sm:$0xff]
    %v2169 = vld [vmem:[%s8 + $0x2b0] sm:$0xff]
    %v2170 = vld [vmem:[%s8 + $0x2b8] sm:$0xf]
    %v2171 = vld [vmem:[%s8 + $0x2bc] sm:$0xff]
    %v2172 = vld [vmem:[%s8 + $0x2c4] sm:$0xff]
    %v2173 = vld [vmem:[%s8 + $0x2cc] sm:$0xff]
    %v2174 = vld [vmem:[%s8 + $0x2d4] sm:$0xf]
    %v2175 = vld [vmem:[%s8 + $0x2d8] sm:$0xff]
    %v2176 = vld [vmem:[%s8 + $0x2e0] sm:$0xff]
    %v2177 = vld [vmem:[%s8 + $0x2e8] sm:$0xff]
    %v2178 = vld [vmem:[%s8 + $0x2f0] sm:$0xf]
    %v2179 = vld [vmem:[%s8 + $0x2f4] sm:$0xff]
    %v2180 = vld [vmem:[%s8 + $0x2fc] sm:$0xff]
    %v2181 = vld [vmem:[%s8 + $0x304] sm:$0xff]
    %v2182 = vld [vmem:[%s8 + $0x30c] sm:$0xf]
    %v2183 = vld [vmem:[%s8 + $0x310] sm:$0xff]
    %v2184 = vld [vmem:[%s8 + $0x318] sm:$0xff]
    %v2185 = vld [vmem:[%s8 + $0x320] sm:$0xff]
    %v2186 = vld [vmem:[%s8 + $0x328] sm:$0xf]
    %v2187 = vld [vmem:[%s8 + $0x32c] sm:$0xff]
    %v2188 = vld [vmem:[%s8 + $0x334] sm:$0xff]
    %v2189 = vld [vmem:[%s8 + $0x33c] sm:$0xff]
    %v2190 = vld [vmem:[%s8 + $0x344] sm:$0xf]
    %v2191 = vld [vmem:[%s8 + $0x348] sm:$0xff]
    %v2192 = vld [vmem:[%s8 + $0x350] sm:$0xff]
    %v2193 = vld [vmem:[%s8 + $0x358] sm:$0xff]
    %v2194 = vld [vmem:[%s8 + $0x360] sm:$0xf]
    %v2195 = vld [vmem:[%s8 + $0x364] sm:$0xff]
    %v2196 = vld [vmem:[%s8 + $0x36c] sm:$0xff]
    %v2197 = vld [vmem:[%s8 + $0x374] sm:$0xff]
    %v2198 = vld [vmem:[%s8 + $0x37c] sm:$0xf]
    %v2199 = vld [vmem:[%s8 + $0x380] sm:$0xff]
    %v2200 = vld [vmem:[%s8 + $0x388] sm:$0xff]
    %v2201 = vld [vmem:[%s8 + $0x390] sm:$0xff]
    %v2202 = vld [vmem:[%s8 + $0x398] sm:$0xf]
    %v2203 = vld [vmem:[%s8 + $0x39c] sm:$0xff]
    %v2204 = vld [vmem:[%s8 + $0x3a4] sm:$0xff]
    %v2205 = vld [vmem:[%s8 + $0x3ac] sm:$0xff]
    %v2206 = vld [vmem:[%s8 + $0x3b4] sm:$0xf]
    %v2207 = vld [vmem:[%s8 + $0x3b8] sm:$0xff]
    %v2208 = vld [vmem:[%s8 + $0x3c0] sm:$0xff]
    %v2209 = vld [vmem:[%s8 + $0x3c8] sm:$0xff]
    %v2210 = vld [vmem:[%s8 + $0x3d0] sm:$0xf]
    %v2211 = vld [vmem:[%s8 + $0x3d4] sm:$0xff]
    %v2212 = vld [vmem:[%s8 + $0x3dc] sm:$0xff]
    %v2213 = vld [vmem:[%s8 + $0x3e4] sm:$0xff]
    %v2214 = vld [vmem:[%s8 + $0x3ec] sm:$0xf]
    %v2215 = vld [vmem:[%s8 + $0x3f0] sm:$0xff]
    %v2216 = vld [vmem:[%s8 + $0x3f8] sm:$0xff]
    %v2217 = vld [vmem:[%s8 + $0x400] sm:$0xff]
    %v2218 = vld [vmem:[%s8 + $0x408] sm:$0xf]
    %v2219 = vld [vmem:[%s8 + $0x40c] sm:$0xff]
    %v2220 = vld [vmem:[%s8 + $0x414] sm:$0xff]
    %v2221 = vld [vmem:[%s8 + $0x41c] sm:$0xff]
    %v2222 = vld [vmem:[%s8 + $0x424] sm:$0xf]
    %v2223 = vld [vmem:[%s8 + $0x428] sm:$0xff]
    %v2224 = vld [vmem:[%s8 + $0x430] sm:$0xff]
    %v2225 = vld [vmem:[%s8 + $0x438] sm:$0xff]
    %v2226 = vld [vmem:[%s8 + $0x440] sm:$0xf]
    %v2227 = vld [vmem:[%s8 + $0x444] sm:$0xff]
    %v2228 = vld [vmem:[%s8 + $0x44c] sm:$0xff]
    %v2229 = vld [vmem:[%s8 + $0x454] sm:$0xff]
    %v2230 = vld [vmem:[%s8 + $0x45c] sm:$0xf]
    %v2231 = vld [vmem:[%s8 + $0x460] sm:$0xff]
    %v2232 = vld [vmem:[%s8 + $0x468] sm:$0xff]
    %v2233 = vld [vmem:[%s8 + $0x470] sm:$0xff]
    %v2234 = vld [vmem:[%s8 + $0x478] sm:$0xf]
    %v2235 = vld [vmem:[%s8 + $0x47c] sm:$0xff]
    %v2236 = vld [vmem:[%s8 + $0x484] sm:$0xff]
    %v2237 = vld [vmem:[%s8 + $0x48c] sm:$0xff]
    %v2238 = vld [vmem:[%s8 + $0x494] sm:$0xf]
    %v2239 = vld [vmem:[%s8 + $0x498] sm:$0xff]
    %v2240 = vld [vmem:[%s8 + $0x4a0] sm:$0xff]
    %v2241 = vld [vmem:[%s8 + $0x4a8] sm:$0xff]
    %v2242 = vld [vmem:[%s8 + $0x4b0] sm:$0xf]
    %v2243 = vld [vmem:[%s8 + $0x4b4] sm:$0xff]
    %v2244 = vld [vmem:[%s8 + $0x4bc] sm:$0xff]
    %v2245 = vld [vmem:[%s8 + $0x4c4] sm:$0xff]
    %v2246 = vld [vmem:[%s8 + $0x4cc] sm:$0xf]
    %v2247 = vld [vmem:[%s8 + $0x4d0] sm:$0xff]
    %v2248 = vld [vmem:[%s8 + $0x4d8] sm:$0xff]
    %v2249 = vld [vmem:[%s8 + $0x4e0] sm:$0xff]
    %v2250 = vld [vmem:[%s8 + $0x4e8] sm:$0xf]
    %v2251 = vld [vmem:[%s8 + $0x4ec] sm:$0xff]
    %v2252 = vld [vmem:[%s8 + $0x4f4] sm:$0xff]
    %v2253 = vld [vmem:[%s8 + $0x4fc] sm:$0xff]
    %v2254 = vld [vmem:[%s8 + $0x504] sm:$0xf]
    %v2255 = vld [vmem:[%s8 + $0x508] sm:$0xff]
    %v2256 = vld [vmem:[%s8 + $0x510] sm:$0xff]
    %v2257 = vld [vmem:[%s8 + $0x518] sm:$0xff]
    %v2258 = vld [vmem:[%s8 + $0x520] sm:$0xf]
    %v2259 = vld [vmem:[%s8 + $0x524] sm:$0xff]
    %v2260 = vld [vmem:[%s8 + $0x52c] sm:$0xff]
    %v2261 = vld [vmem:[%s8 + $0x534] sm:$0xff]
    %v2262 = vld [vmem:[%s8 + $0x53c] sm:$0xf]
    %v2263 = vld [vmem:[%s8 + $0x540] sm:$0xff]
    %v2264 = vld [vmem:[%s8 + $0x548] sm:$0xff]
    %v2265 = vld [vmem:[%s8 + $0x550] sm:$0xff]
    %v2266 = vld [vmem:[%s8 + $0x558] sm:$0xf]
    %v2267 = vld [vmem:[%s8 + $0x55c] sm:$0xff]
    %v2268 = vld [vmem:[%s8 + $0x564] sm:$0xff]
    %v2269 = vld [vmem:[%s8 + $0x56c] sm:$0xff]
    %v2270 = vld [vmem:[%s8 + $0x574] sm:$0xf]
    %v2271 = vld [vmem:[%s9] sm:$0x7f]
    %v2273 = vlaneseq
    %v2274 = vshrl.u32 %v2273, 7
    %v2275 = vsub.s32 0, %v2274
    %v2276 = vrot.slane %v2271, %v2275
    %v2277 = vlaneseq
    %v2278 = vshrl.u32 %v2277, 7
    %v2279 = vsub.s32 1, %v2278
    %v2280 = vrot.slane %v2271, %v2279
    %v2281 = vlaneseq
    %v2282 = vshrl.u32 %v2281, 7
    %v2283 = vsub.s32 2, %v2282
    %v2284 = vrot.slane %v2271, %v2283
    %v2285 = vlaneseq
    %v2286 = vshrl.u32 %v2285, 7
    %v2287 = vsub.s32 3, %v2286
    %v2288 = vrot.slane %v2271, %v2287
    %v2289 = vlaneseq
    %v2290 = vshrl.u32 %v2289, 7
    %v2291 = vsub.s32 4, %v2290
    %v2292 = vrot.slane %v2271, %v2291
    %v2293 = vlaneseq
    %v2294 = vshrl.u32 %v2293, 7
    %v2295 = vsub.s32 5, %v2294
    %v2296 = vrot.slane %v2271, %v2295
    %v2297 = vlaneseq
    %v2298 = vshrl.u32 %v2297, 7
    %v2299 = vsub.s32 6, %v2298
    %v2300 = vrot.slane %v2271, %v2299
    %v2508 = vunpack.c.l.b16 %v2071
    %v2509 = vunpack.c.h.b16 %v2071
    %v2510 = vunpack.c.l.b16 %v2072
    %v2511 = vunpack.c.h.b16 %v2072
    %v2512 = vunpack.c.l.b16 %v2073
    %v2513 = vunpack.c.h.b16 %v2073
    %v2514 = vunpack.c.l.b16 %v2074
    %v2515 = vunpack.c.l.b16 %v2075
    %v2516 = vunpack.c.h.b16 %v2075
    %v2517 = vunpack.c.l.b16 %v2076
    %v2518 = vunpack.c.h.b16 %v2076
    %v2519 = vunpack.c.l.b16 %v2077
    %v2520 = vunpack.c.h.b16 %v2077
    %v2521 = vunpack.c.l.b16 %v2078
    %v2522 = vunpack.c.l.b16 %v2079
    %v2523 = vunpack.c.h.b16 %v2079
    %v2524 = vunpack.c.l.b16 %v2080
    %v2525 = vunpack.c.h.b16 %v2080
    %v2526 = vunpack.c.l.b16 %v2081
    %v2527 = vunpack.c.h.b16 %v2081
    %v2528 = vunpack.c.l.b16 %v2082
    %v2529 = vunpack.c.l.b16 %v2083
    %v2530 = vunpack.c.h.b16 %v2083
    %v2531 = vunpack.c.l.b16 %v2084
    %v2532 = vunpack.c.h.b16 %v2084
    %v2533 = vunpack.c.l.b16 %v2085
    %v2534 = vunpack.c.h.b16 %v2085
    %v2535 = vunpack.c.l.b16 %v2086
    %v2536 = vunpack.c.l.b16 %v2087
    %v2537 = vunpack.c.h.b16 %v2087
    %v2538 = vunpack.c.l.b16 %v2088
    %v2539 = vunpack.c.h.b16 %v2088
    %v2540 = vunpack.c.l.b16 %v2089
    %v2541 = vunpack.c.h.b16 %v2089
    %v2542 = vunpack.c.l.b16 %v2090
    %v2543 = vunpack.c.l.b16 %v2091
    %v2544 = vunpack.c.h.b16 %v2091
    %v2545 = vunpack.c.l.b16 %v2092
    %v2546 = vunpack.c.h.b16 %v2092
    %v2547 = vunpack.c.l.b16 %v2093
    %v2548 = vunpack.c.h.b16 %v2093
    %v2549 = vunpack.c.l.b16 %v2094
    %v2550 = vunpack.c.l.b16 %v2095
    %v2551 = vunpack.c.h.b16 %v2095
    %v2552 = vunpack.c.l.b16 %v2096
    %v2553 = vunpack.c.h.b16 %v2096
    %v2554 = vunpack.c.l.b16 %v2097
    %v2555 = vunpack.c.h.b16 %v2097
    %v2556 = vunpack.c.l.b16 %v2098
    %v2557 = vunpack.c.l.b16 %v2099
    %v2558 = vunpack.c.h.b16 %v2099
    %v2559 = vunpack.c.l.b16 %v2100
    %v2560 = vunpack.c.h.b16 %v2100
    %v2561 = vunpack.c.l.b16 %v2101
    %v2562 = vunpack.c.h.b16 %v2101
    %v2563 = vunpack.c.l.b16 %v2102
    %v2564 = vunpack.c.l.b16 %v2103
    %v2565 = vunpack.c.h.b16 %v2103
    %v2566 = vunpack.c.l.b16 %v2104
    %v2567 = vunpack.c.h.b16 %v2104
    %v2568 = vunpack.c.l.b16 %v2105
    %v2569 = vunpack.c.h.b16 %v2105
    %v2570 = vunpack.c.l.b16 %v2106
    %v2571 = vunpack.c.l.b16 %v2107
    %v2572 = vunpack.c.h.b16 %v2107
    %v2573 = vunpack.c.l.b16 %v2108
    %v2574 = vunpack.c.h.b16 %v2108
    %v2575 = vunpack.c.l.b16 %v2109
    %v2576 = vunpack.c.h.b16 %v2109
    %v2577 = vunpack.c.l.b16 %v2110
    %v2578 = vunpack.c.l.b16 %v2111
    %v2579 = vunpack.c.h.b16 %v2111
    %v2580 = vunpack.c.l.b16 %v2112
    %v2581 = vunpack.c.h.b16 %v2112
    %v2582 = vunpack.c.l.b16 %v2113
    %v2583 = vunpack.c.h.b16 %v2113
    %v2584 = vunpack.c.l.b16 %v2114
    %v2585 = vunpack.c.l.b16 %v2115
    %v2586 = vunpack.c.h.b16 %v2115
    %v2587 = vunpack.c.l.b16 %v2116
    %v2588 = vunpack.c.h.b16 %v2116
    %v2589 = vunpack.c.l.b16 %v2117
    %v2590 = vunpack.c.h.b16 %v2117
    %v2591 = vunpack.c.l.b16 %v2118
    %v2592 = vunpack.c.l.b16 %v2119
    %v2593 = vunpack.c.h.b16 %v2119
    %v2594 = vunpack.c.l.b16 %v2120
    %v2595 = vunpack.c.h.b16 %v2120
    %v2596 = vunpack.c.l.b16 %v2121
    %v2597 = vunpack.c.h.b16 %v2121
    %v2598 = vunpack.c.l.b16 %v2122
    %v2599 = vunpack.c.l.b16 %v2123
    %v2600 = vunpack.c.h.b16 %v2123
    %v2601 = vunpack.c.l.b16 %v2124
    %v2602 = vunpack.c.h.b16 %v2124
    %v2603 = vunpack.c.l.b16 %v2125
    %v2604 = vunpack.c.h.b16 %v2125
    %v2605 = vunpack.c.l.b16 %v2126
    %v2606 = vunpack.c.l.b16 %v2127
    %v2607 = vunpack.c.h.b16 %v2127
    %v2608 = vunpack.c.l.b16 %v2128
    %v2609 = vunpack.c.h.b16 %v2128
    %v2610 = vunpack.c.l.b16 %v2129
    %v2611 = vunpack.c.h.b16 %v2129
    %v2612 = vunpack.c.l.b16 %v2130
    %v2613 = vunpack.c.l.b16 %v2131
    %v2614 = vunpack.c.h.b16 %v2131
    %v2615 = vunpack.c.l.b16 %v2132
    %v2616 = vunpack.c.h.b16 %v2132
    %v2617 = vunpack.c.l.b16 %v2133
    %v2618 = vunpack.c.h.b16 %v2133
    %v2619 = vunpack.c.l.b16 %v2134
    %v2620 = vunpack.c.l.b16 %v2135
    %v2621 = vunpack.c.h.b16 %v2135
    %v2622 = vunpack.c.l.b16 %v2136
    %v2623 = vunpack.c.h.b16 %v2136
    %v2624 = vunpack.c.l.b16 %v2137
    %v2625 = vunpack.c.h.b16 %v2137
    %v2626 = vunpack.c.l.b16 %v2138
    %v2627 = vunpack.c.l.b16 %v2139
    %v2628 = vunpack.c.h.b16 %v2139
    %v2629 = vunpack.c.l.b16 %v2140
    %v2630 = vunpack.c.h.b16 %v2140
    %v2631 = vunpack.c.l.b16 %v2141
    %v2632 = vunpack.c.h.b16 %v2141
    %v2633 = vunpack.c.l.b16 %v2142
    %v2634 = vunpack.c.l.b16 %v2143
    %v2635 = vunpack.c.h.b16 %v2143
    %v2636 = vunpack.c.l.b16 %v2144
    %v2637 = vunpack.c.h.b16 %v2144
    %v2638 = vunpack.c.l.b16 %v2145
    %v2639 = vunpack.c.h.b16 %v2145
    %v2640 = vunpack.c.l.b16 %v2146
    %v2641 = vunpack.c.l.b16 %v2147
    %v2642 = vunpack.c.h.b16 %v2147
    %v2643 = vunpack.c.l.b16 %v2148
    %v2644 = vunpack.c.h.b16 %v2148
    %v2645 = vunpack.c.l.b16 %v2149
    %v2646 = vunpack.c.h.b16 %v2149
    %v2647 = vunpack.c.l.b16 %v2150
    %v2648 = vunpack.c.l.b16 %v2151
    %v2649 = vunpack.c.h.b16 %v2151
    %v2650 = vunpack.c.l.b16 %v2152
    %v2651 = vunpack.c.h.b16 %v2152
    %v2652 = vunpack.c.l.b16 %v2153
    %v2653 = vunpack.c.h.b16 %v2153
    %v2654 = vunpack.c.l.b16 %v2154
    %v2655 = vunpack.c.l.b16 %v2155
    %v2656 = vunpack.c.h.b16 %v2155
    %v2657 = vunpack.c.l.b16 %v2156
    %v2658 = vunpack.c.h.b16 %v2156
    %v2659 = vunpack.c.l.b16 %v2157
    %v2660 = vunpack.c.h.b16 %v2157
    %v2661 = vunpack.c.l.b16 %v2158
    %v2662 = vunpack.c.l.b16 %v2159
    %v2663 = vunpack.c.h.b16 %v2159
    %v2664 = vunpack.c.l.b16 %v2160
    %v2665 = vunpack.c.h.b16 %v2160
    %v2666 = vunpack.c.l.b16 %v2161
    %v2667 = vunpack.c.h.b16 %v2161
    %v2668 = vunpack.c.l.b16 %v2162
    %v2669 = vunpack.c.l.b16 %v2163
    %v2670 = vunpack.c.h.b16 %v2163
    %v2671 = vunpack.c.l.b16 %v2164
    %v2672 = vunpack.c.h.b16 %v2164
    %v2673 = vunpack.c.l.b16 %v2165
    %v2674 = vunpack.c.h.b16 %v2165
    %v2675 = vunpack.c.l.b16 %v2166
    %v2676 = vunpack.c.l.b16 %v2167
    %v2677 = vunpack.c.h.b16 %v2167
    %v2678 = vunpack.c.l.b16 %v2168
    %v2679 = vunpack.c.h.b16 %v2168
    %v2680 = vunpack.c.l.b16 %v2169
    %v2681 = vunpack.c.h.b16 %v2169
    %v2682 = vunpack.c.l.b16 %v2170
    %v2683 = vunpack.c.l.b16 %v2171
    %v2684 = vunpack.c.h.b16 %v2171
    %v2685 = vunpack.c.l.b16 %v2172
    %v2686 = vunpack.c.h.b16 %v2172
    %v2687 = vunpack.c.l.b16 %v2173
    %v2688 = vunpack.c.h.b16 %v2173
    %v2689 = vunpack.c.l.b16 %v2174
    %v2690 = vunpack.c.l.b16 %v2175
    %v2691 = vunpack.c.h.b16 %v2175
    %v2692 = vunpack.c.l.b16 %v2176
    %v2693 = vunpack.c.h.b16 %v2176
    %v2694 = vunpack.c.l.b16 %v2177
    %v2695 = vunpack.c.h.b16 %v2177
    %v2696 = vunpack.c.l.b16 %v2178
    %v2697 = vunpack.c.l.b16 %v2179
    %v2698 = vunpack.c.h.b16 %v2179
    %v2699 = vunpack.c.l.b16 %v2180
    %v2700 = vunpack.c.h.b16 %v2180
    %v2701 = vunpack.c.l.b16 %v2181
    %v2702 = vunpack.c.h.b16 %v2181
    %v2703 = vunpack.c.l.b16 %v2182
    %v2704 = vunpack.c.l.b16 %v2183
    %v2705 = vunpack.c.h.b16 %v2183
    %v2706 = vunpack.c.l.b16 %v2184
    %v2707 = vunpack.c.h.b16 %v2184
    %v2708 = vunpack.c.l.b16 %v2185
    %v2709 = vunpack.c.h.b16 %v2185
    %v2710 = vunpack.c.l.b16 %v2186
    %v2711 = vunpack.c.l.b16 %v2187
    %v2712 = vunpack.c.h.b16 %v2187
    %v2713 = vunpack.c.l.b16 %v2188
    %v2714 = vunpack.c.h.b16 %v2188
    %v2715 = vunpack.c.l.b16 %v2189
    %v2716 = vunpack.c.h.b16 %v2189
    %v2717 = vunpack.c.l.b16 %v2190
    %v2718 = vunpack.c.l.b16 %v2191
    %v2719 = vunpack.c.h.b16 %v2191
    %v2720 = vunpack.c.l.b16 %v2192
    %v2721 = vunpack.c.h.b16 %v2192
    %v2722 = vunpack.c.l.b16 %v2193
    %v2723 = vunpack.c.h.b16 %v2193
    %v2724 = vunpack.c.l.b16 %v2194
    %v2725 = vunpack.c.l.b16 %v2195
    %v2726 = vunpack.c.h.b16 %v2195
    %v2727 = vunpack.c.l.b16 %v2196
    %v2728 = vunpack.c.h.b16 %v2196
    %v2729 = vunpack.c.l.b16 %v2197
    %v2730 = vunpack.c.h.b16 %v2197
    %v2731 = vunpack.c.l.b16 %v2198
    %v2732 = vunpack.c.l.b16 %v2199
    %v2733 = vunpack.c.h.b16 %v2199
    %v2734 = vunpack.c.l.b16 %v2200
    %v2735 = vunpack.c.h.b16 %v2200
    %v2736 = vunpack.c.l.b16 %v2201
    %v2737 = vunpack.c.h.b16 %v2201
    %v2738 = vunpack.c.l.b16 %v2202
    %v2739 = vunpack.c.l.b16 %v2203
    %v2740 = vunpack.c.h.b16 %v2203
    %v2741 = vunpack.c.l.b16 %v2204
    %v2742 = vunpack.c.h.b16 %v2204
    %v2743 = vunpack.c.l.b16 %v2205
    %v2744 = vunpack.c.h.b16 %v2205
    %v2745 = vunpack.c.l.b16 %v2206
    %v2746 = vunpack.c.l.b16 %v2207
    %v2747 = vunpack.c.h.b16 %v2207
    %v2748 = vunpack.c.l.b16 %v2208
    %v2749 = vunpack.c.h.b16 %v2208
    %v2750 = vunpack.c.l.b16 %v2209
    %v2751 = vunpack.c.h.b16 %v2209
    %v2752 = vunpack.c.l.b16 %v2210
    %v2753 = vunpack.c.l.b16 %v2211
    %v2754 = vunpack.c.h.b16 %v2211
    %v2755 = vunpack.c.l.b16 %v2212
    %v2756 = vunpack.c.h.b16 %v2212
    %v2757 = vunpack.c.l.b16 %v2213
    %v2758 = vunpack.c.h.b16 %v2213
    %v2759 = vunpack.c.l.b16 %v2214
    %v2760 = vunpack.c.l.b16 %v2215
    %v2761 = vunpack.c.h.b16 %v2215
    %v2762 = vunpack.c.l.b16 %v2216
    %v2763 = vunpack.c.h.b16 %v2216
    %v2764 = vunpack.c.l.b16 %v2217
    %v2765 = vunpack.c.h.b16 %v2217
    %v2766 = vunpack.c.l.b16 %v2218
    %v2767 = vunpack.c.l.b16 %v2219
    %v2768 = vunpack.c.h.b16 %v2219
    %v2769 = vunpack.c.l.b16 %v2220
    %v2770 = vunpack.c.h.b16 %v2220
    %v2771 = vunpack.c.l.b16 %v2221
    %v2772 = vunpack.c.h.b16 %v2221
    %v2773 = vunpack.c.l.b16 %v2222
    %v2774 = vunpack.c.l.b16 %v2223
    %v2775 = vunpack.c.h.b16 %v2223
    %v2776 = vunpack.c.l.b16 %v2224
    %v2777 = vunpack.c.h.b16 %v2224
    %v2778 = vunpack.c.l.b16 %v2225
    %v2779 = vunpack.c.h.b16 %v2225
    %v2780 = vunpack.c.l.b16 %v2226
    %v2781 = vunpack.c.l.b16 %v2227
    %v2782 = vunpack.c.h.b16 %v2227
    %v2783 = vunpack.c.l.b16 %v2228
    %v2784 = vunpack.c.h.b16 %v2228
    %v2785 = vunpack.c.l.b16 %v2229
    %v2786 = vunpack.c.h.b16 %v2229
    %v2787 = vunpack.c.l.b16 %v2230
    %v2788 = vunpack.c.l.b16 %v2231
    %v2789 = vunpack.c.h.b16 %v2231
    %v2790 = vunpack.c.l.b16 %v2232
    %v2791 = vunpack.c.h.b16 %v2232
    %v2792 = vunpack.c.l.b16 %v2233
    %v2793 = vunpack.c.h.b16 %v2233
    %v2794 = vunpack.c.l.b16 %v2234
    %v2795 = vunpack.c.l.b16 %v2235
    %v2796 = vunpack.c.h.b16 %v2235
    %v2797 = vunpack.c.l.b16 %v2236
    %v2798 = vunpack.c.h.b16 %v2236
    %v2799 = vunpack.c.l.b16 %v2237
    %v2800 = vunpack.c.h.b16 %v2237
    %v2801 = vunpack.c.l.b16 %v2238
    %v2802 = vunpack.c.l.b16 %v2239
    %v2803 = vunpack.c.h.b16 %v2239
    %v2804 = vunpack.c.l.b16 %v2240
    %v2805 = vunpack.c.h.b16 %v2240
    %v2806 = vunpack.c.l.b16 %v2241
    %v2807 = vunpack.c.h.b16 %v2241
    %v2808 = vunpack.c.l.b16 %v2242
    %v2809 = vunpack.c.l.b16 %v2243
    %v2810 = vunpack.c.h.b16 %v2243
    %v2811 = vunpack.c.l.b16 %v2244
    %v2812 = vunpack.c.h.b16 %v2244
    %v2813 = vunpack.c.l.b16 %v2245
    %v2814 = vunpack.c.h.b16 %v2245
    %v2815 = vunpack.c.l.b16 %v2246
    %v2816 = vunpack.c.l.b16 %v2247
    %v2817 = vunpack.c.h.b16 %v2247
    %v2818 = vunpack.c.l.b16 %v2248
    %v2819 = vunpack.c.h.b16 %v2248
    %v2820 = vunpack.c.l.b16 %v2249
    %v2821 = vunpack.c.h.b16 %v2249
    %v2822 = vunpack.c.l.b16 %v2250
    %v2823 = vunpack.c.l.b16 %v2251
    %v2824 = vunpack.c.h.b16 %v2251
    %v2825 = vunpack.c.l.b16 %v2252
    %v2826 = vunpack.c.h.b16 %v2252
    %v2827 = vunpack.c.l.b16 %v2253
    %v2828 = vunpack.c.h.b16 %v2253
    %v2829 = vunpack.c.l.b16 %v2254
    %v2830 = vunpack.c.l.b16 %v2255
    %v2831 = vunpack.c.h.b16 %v2255
    %v2832 = vunpack.c.l.b16 %v2256
    %v2833 = vunpack.c.h.b16 %v2256
    %v2834 = vunpack.c.l.b16 %v2257
    %v2835 = vunpack.c.h.b16 %v2257
    %v2836 = vunpack.c.l.b16 %v2258
    %v2837 = vunpack.c.l.b16 %v2259
    %v2838 = vunpack.c.h.b16 %v2259
    %v2839 = vunpack.c.l.b16 %v2260
    %v2840 = vunpack.c.h.b16 %v2260
    %v2841 = vunpack.c.l.b16 %v2261
    %v2842 = vunpack.c.h.b16 %v2261
    %v2843 = vunpack.c.l.b16 %v2262
    %v2844 = vunpack.c.l.b16 %v2263
    %v2845 = vunpack.c.h.b16 %v2263
    %v2846 = vunpack.c.l.b16 %v2264
    %v2847 = vunpack.c.h.b16 %v2264
    %v2848 = vunpack.c.l.b16 %v2265
    %v2849 = vunpack.c.h.b16 %v2265
    %v2850 = vunpack.c.l.b16 %v2266
    %v2851 = vunpack.c.l.b16 %v2267
    %v2852 = vunpack.c.h.b16 %v2267
    %v2853 = vunpack.c.l.b16 %v2268
    %v2854 = vunpack.c.h.b16 %v2268
    %v2855 = vunpack.c.l.b16 %v2269
    %v2856 = vunpack.c.h.b16 %v2269
    %v2857 = vunpack.c.l.b16 %v2270
    %v2858 = vpack.c.b16 %v2515, %v2508
    %v2859 = vpack.c.b16 %v2516, %v2509
    %v2860 = vpack.c.b16 %v2517, %v2510
    %v2861 = vpack.c.b16 %v2518, %v2511
    %v2862 = vpack.c.b16 %v2519, %v2512
    %v2863 = vpack.c.b16 %v2520, %v2513
    %v2864 = vpack.c.b16 %v2521, %v2514
    %v2865 = vpack.c.b16 %v2529, %v2522
    %v2866 = vpack.c.b16 %v2530, %v2523
    %v2867 = vpack.c.b16 %v2531, %v2524
    %v2868 = vpack.c.b16 %v2532, %v2525
    %v2869 = vpack.c.b16 %v2533, %v2526
    %v2870 = vpack.c.b16 %v2534, %v2527
    %v2871 = vpack.c.b16 %v2535, %v2528
    %v2872 = vpack.c.b16 %v2543, %v2536
    %v2873 = vpack.c.b16 %v2544, %v2537
    %v2874 = vpack.c.b16 %v2545, %v2538
    %v2875 = vpack.c.b16 %v2546, %v2539
    %v2876 = vpack.c.b16 %v2547, %v2540
    %v2877 = vpack.c.b16 %v2548, %v2541
    %v2878 = vpack.c.b16 %v2549, %v2542
    %v2879 = vpack.c.b16 %v2557, %v2550
    %v2880 = vpack.c.b16 %v2558, %v2551
    %v2881 = vpack.c.b16 %v2559, %v2552
    %v2882 = vpack.c.b16 %v2560, %v2553
    %v2883 = vpack.c.b16 %v2561, %v2554
    %v2884 = vpack.c.b16 %v2562, %v2555
    %v2885 = vpack.c.b16 %v2563, %v2556
    %v2886 = vpack.c.b16 %v2571, %v2564
    %v2887 = vpack.c.b16 %v2572, %v2565
    %v2888 = vpack.c.b16 %v2573, %v2566
    %v2889 = vpack.c.b16 %v2574, %v2567
    %v2890 = vpack.c.b16 %v2575, %v2568
    %v2891 = vpack.c.b16 %v2576, %v2569
    %v2892 = vpack.c.b16 %v2577, %v2570
    %v2893 = vpack.c.b16 %v2585, %v2578
    %v2894 = vpack.c.b16 %v2586, %v2579
    %v2895 = vpack.c.b16 %v2587, %v2580
    %v2896 = vpack.c.b16 %v2588, %v2581
    %v2897 = vpack.c.b16 %v2589, %v2582
    %v2898 = vpack.c.b16 %v2590, %v2583
    %v2899 = vpack.c.b16 %v2591, %v2584
    %v2900 = vpack.c.b16 %v2599, %v2592
    %v2901 = vpack.c.b16 %v2600, %v2593
    %v2902 = vpack.c.b16 %v2601, %v2594
    %v2903 = vpack.c.b16 %v2602, %v2595
    %v2904 = vpack.c.b16 %v2603, %v2596
    %v2905 = vpack.c.b16 %v2604, %v2597
    %v2906 = vpack.c.b16 %v2605, %v2598
    %v2907 = vpack.c.b16 %v2613, %v2606
    %v2908 = vpack.c.b16 %v2614, %v2607
    %v2909 = vpack.c.b16 %v2615, %v2608
    %v2910 = vpack.c.b16 %v2616, %v2609
    %v2911 = vpack.c.b16 %v2617, %v2610
    %v2912 = vpack.c.b16 %v2618, %v2611
    %v2913 = vpack.c.b16 %v2619, %v2612
    %v2914 = vpack.c.b16 %v2627, %v2620
    %v2915 = vpack.c.b16 %v2628, %v2621
    %v2916 = vpack.c.b16 %v2629, %v2622
    %v2917 = vpack.c.b16 %v2630, %v2623
    %v2918 = vpack.c.b16 %v2631, %v2624
    %v2919 = vpack.c.b16 %v2632, %v2625
    %v2920 = vpack.c.b16 %v2633, %v2626
    %v2921 = vpack.c.b16 %v2641, %v2634
    %v2922 = vpack.c.b16 %v2642, %v2635
    %v2923 = vpack.c.b16 %v2643, %v2636
    %v2924 = vpack.c.b16 %v2644, %v2637
    %v2925 = vpack.c.b16 %v2645, %v2638
    %v2926 = vpack.c.b16 %v2646, %v2639
    %v2927 = vpack.c.b16 %v2647, %v2640
    %v2928 = vpack.c.b16 %v2655, %v2648
    %v2929 = vpack.c.b16 %v2656, %v2649
    %v2930 = vpack.c.b16 %v2657, %v2650
    %v2931 = vpack.c.b16 %v2658, %v2651
    %v2932 = vpack.c.b16 %v2659, %v2652
    %v2933 = vpack.c.b16 %v2660, %v2653
    %v2934 = vpack.c.b16 %v2661, %v2654
    %v2935 = vpack.c.b16 %v2669, %v2662
    %v2936 = vpack.c.b16 %v2670, %v2663
    %v2937 = vpack.c.b16 %v2671, %v2664
    %v2938 = vpack.c.b16 %v2672, %v2665
    %v2939 = vpack.c.b16 %v2673, %v2666
    %v2940 = vpack.c.b16 %v2674, %v2667
    %v2941 = vpack.c.b16 %v2675, %v2668
    %v2942 = vpack.c.b16 %v2683, %v2676
    %v2943 = vpack.c.b16 %v2684, %v2677
    %v2944 = vpack.c.b16 %v2685, %v2678
    %v2945 = vpack.c.b16 %v2686, %v2679
    %v2946 = vpack.c.b16 %v2687, %v2680
    %v2947 = vpack.c.b16 %v2688, %v2681
    %v2948 = vpack.c.b16 %v2689, %v2682
    %v2949 = vpack.c.b16 %v2697, %v2690
    %v2950 = vpack.c.b16 %v2698, %v2691
    %v2951 = vpack.c.b16 %v2699, %v2692
    %v2952 = vpack.c.b16 %v2700, %v2693
    %v2953 = vpack.c.b16 %v2701, %v2694
    %v2954 = vpack.c.b16 %v2702, %v2695
    %v2955 = vpack.c.b16 %v2703, %v2696
    %v2956 = vpack.c.b16 %v2711, %v2704
    %v2957 = vpack.c.b16 %v2712, %v2705
    %v2958 = vpack.c.b16 %v2713, %v2706
    %v2959 = vpack.c.b16 %v2714, %v2707
    %v2960 = vpack.c.b16 %v2715, %v2708
    %v2961 = vpack.c.b16 %v2716, %v2709
    %v2962 = vpack.c.b16 %v2717, %v2710
    %v2963 = vpack.c.b16 %v2725, %v2718
    %v2964 = vpack.c.b16 %v2726, %v2719
    %v2965 = vpack.c.b16 %v2727, %v2720
    %v2966 = vpack.c.b16 %v2728, %v2721
    %v2967 = vpack.c.b16 %v2729, %v2722
    %v2968 = vpack.c.b16 %v2730, %v2723
    %v2969 = vpack.c.b16 %v2731, %v2724
    %v2970 = vpack.c.b16 %v2739, %v2732
    %v2971 = vpack.c.b16 %v2740, %v2733
    %v2972 = vpack.c.b16 %v2741, %v2734
    %v2973 = vpack.c.b16 %v2742, %v2735
    %v2974 = vpack.c.b16 %v2743, %v2736
    %v2975 = vpack.c.b16 %v2744, %v2737
    %v2976 = vpack.c.b16 %v2745, %v2738
    %v2977 = vpack.c.b16 %v2753, %v2746
    %v2978 = vpack.c.b16 %v2754, %v2747
    %v2979 = vpack.c.b16 %v2755, %v2748
    %v2980 = vpack.c.b16 %v2756, %v2749
    %v2981 = vpack.c.b16 %v2757, %v2750
    %v2982 = vpack.c.b16 %v2758, %v2751
    %v2983 = vpack.c.b16 %v2759, %v2752
    %v2984 = vpack.c.b16 %v2767, %v2760
    %v2985 = vpack.c.b16 %v2768, %v2761
    %v2986 = vpack.c.b16 %v2769, %v2762
    %v2987 = vpack.c.b16 %v2770, %v2763
    %v2988 = vpack.c.b16 %v2771, %v2764
    %v2989 = vpack.c.b16 %v2772, %v2765
    %v2990 = vpack.c.b16 %v2773, %v2766
    %v2991 = vpack.c.b16 %v2781, %v2774
    %v2992 = vpack.c.b16 %v2782, %v2775
    %v2993 = vpack.c.b16 %v2783, %v2776
    %v2994 = vpack.c.b16 %v2784, %v2777
    %v2995 = vpack.c.b16 %v2785, %v2778
    %v2996 = vpack.c.b16 %v2786, %v2779
    %v2997 = vpack.c.b16 %v2787, %v2780
    %v2998 = vpack.c.b16 %v2795, %v2788
    %v2999 = vpack.c.b16 %v2796, %v2789
    %v3000 = vpack.c.b16 %v2797, %v2790
    %v3001 = vpack.c.b16 %v2798, %v2791
    %v3002 = vpack.c.b16 %v2799, %v2792
    %v3003 = vpack.c.b16 %v2800, %v2793
    %v3004 = vpack.c.b16 %v2801, %v2794
    %v3005 = vpack.c.b16 %v2809, %v2802
    %v3006 = vpack.c.b16 %v2810, %v2803
    %v3007 = vpack.c.b16 %v2811, %v2804
    %v3008 = vpack.c.b16 %v2812, %v2805
    %v3009 = vpack.c.b16 %v2813, %v2806
    %v3010 = vpack.c.b16 %v2814, %v2807
    %v3011 = vpack.c.b16 %v2815, %v2808
    %v3012 = vpack.c.b16 %v2823, %v2816
    %v3013 = vpack.c.b16 %v2824, %v2817
    %v3014 = vpack.c.b16 %v2825, %v2818
    %v3015 = vpack.c.b16 %v2826, %v2819
    %v3016 = vpack.c.b16 %v2827, %v2820
    %v3017 = vpack.c.b16 %v2828, %v2821
    %v3018 = vpack.c.b16 %v2829, %v2822
    %v3019 = vpack.c.b16 %v2837, %v2830
    %v3020 = vpack.c.b16 %v2838, %v2831
    %v3021 = vpack.c.b16 %v2839, %v2832
    %v3022 = vpack.c.b16 %v2840, %v2833
    %v3023 = vpack.c.b16 %v2841, %v2834
    %v3024 = vpack.c.b16 %v2842, %v2835
    %v3025 = vpack.c.b16 %v2843, %v2836
    %v3026 = vpack.c.b16 %v2851, %v2844
    %v3027 = vpack.c.b16 %v2852, %v2845
    %v3028 = vpack.c.b16 %v2853, %v2846
    %v3029 = vpack.c.b16 %v2854, %v2847
    %v3030 = vpack.c.b16 %v2855, %v2848
    %v3031 = vpack.c.b16 %v2856, %v2849
    %v3032 = vpack.c.b16 %v2857, %v2850
    %v3209 = vsel %vm1266, %v2070, 0
    %3211 = vmatprep.subr.bf16.mxu0 %v2908
    %3212 = vmatpush1.bf16.msra.mxu0 %v2907
    %3213 = vmatprep.subr.bf16.mxu0 %v2901
    %3214 = vmatpush1.bf16.msra.mxu0 %v2900
    %3215 = vmatprep.subr.bf16.mxu0 %v2894
    %3216 = vmatpush1.bf16.msra.mxu0 %v2893
    %3217 = vmatprep.subr.bf16.mxu0 %v2887
    %3218 = vmatpush1.bf16.msra.mxu0 %v2886
    %3219 = vmatprep.subr.bf16.mxu0 %v2880
    %3220 = vmatpush1.bf16.msra.mxu0 %v2879
    %3221 = vmatprep.subr.bf16.mxu0 %v2873
    %3222 = vmatpush1.bf16.msra.mxu0 %v2872
    %3223 = vmatprep.subr.bf16.mxu0 %v2866
    %3224 = vmatpush1.bf16.msra.mxu0 %v2865
    %3225 = vmatprep.subr.bf16.mxu0 %v2859
    %3226 = vmatpush1.bf16.msra.mxu0 %v2858
    %3227 = vmatprep.subr.bf16.mxu0 %v2964
    %3228 = vmatpush2.bf16.msra.mxu0 %v2963
    %3229 = vmatprep.subr.bf16.mxu0 %v2957
    %3230 = vmatpush2.bf16.msra.mxu0 %v2956
    %3231 = vmatprep.subr.bf16.mxu0 %v2950
    %3232 = vmatpush2.bf16.msra.mxu0 %v2949
    %3233 = vmatprep.subr.bf16.mxu0 %v2943
    %3234 = vmatpush2.bf16.msra.mxu0 %v2942
    %3235 = vmatprep.subr.bf16.mxu0 %v2936
    %3236 = vmatpush2.bf16.msra.mxu0 %v2935
    %3237 = vmatprep.subr.bf16.mxu0 %v2929
    %3238 = vmatpush2.bf16.msra.mxu0 %v2928
    %3239 = vmatprep.subr.bf16.mxu0 %v2922
    %3240 = vmatpush2.bf16.msra.mxu0 %v2921
    %3241 = vmatprep.subr.bf16.mxu0 %v2915
    %3242 = vmatpush2.bf16.msra.mxu0 %v2914
    %3243 = vmatprep.mubr.bf16.mxu0 %v2068
    %3244 = vmatmul.mubr.bf16.gmra.mxu0 %v2067
    %v3245 = vpop.f32.mrf.mxu0
    %v3246 = vadd.f32 %v2276, %v3245
    %v3247 = vpop.f32.mrf.mxu0
    %v3248 = vadd.f32 %v2280, %v3247
    %v3249 = vpop.f32.mrf.mxu0
    %v3250 = vpop.f32.mrf.mxu0
    %3251 = vdwg.mxu0
    %3252 = vmatprep.subr.bf16.mxu0 %v3020
    %3253 = vmatpush1.bf16.msra.mxu0 %v3019
    %3254 = vmatprep.subr.bf16.mxu0 %v3013
    %3255 = vmatpush1.bf16.msra.mxu0 %v3012
    %3256 = vmatprep.subr.bf16.mxu0 %v3006
    %3257 = vmatpush1.bf16.msra.mxu0 %v3005
    %3258 = vmatprep.subr.bf16.mxu0 %v2999
    %3259 = vmatpush1.bf16.msra.mxu0 %v2998
    %3260 = vmatprep.subr.bf16.mxu0 %v2992
    %3261 = vmatpush1.bf16.msra.mxu0 %v2991
    %3262 = vmatprep.subr.bf16.mxu0 %v2985
    %3263 = vmatpush1.bf16.msra.mxu0 %v2984
    %3264 = vmatprep.subr.bf16.mxu0 %v2978
    %3265 = vmatpush1.bf16.msra.mxu0 %v2977
    %3266 = vmatprep.subr.bf16.mxu0 %v2971
    %3267 = vmatpush1.bf16.msra.mxu0 %v2970
    %3268 = vmatprep.subr.bf16.mxu0 0
    %3269 = vmatpush2.bf16.msra.mxu0 0
    %3270 = vmatprep.subr.bf16.mxu0 0
    %3271 = vmatpush2.bf16.msra.mxu0 0
    %3272 = vmatprep.subr.bf16.mxu0 0
    %3273 = vmatpush2.bf16.msra.mxu0 0
    %3274 = vmatprep.subr.bf16.mxu0 0
    %3275 = vmatpush2.bf16.msra.mxu0 0
    %3276 = vmatprep.subr.bf16.mxu0 0
    %3277 = vmatpush2.bf16.msra.mxu0 0
    %3278 = vmatprep.subr.bf16.mxu0 0
    %3279 = vmatpush2.bf16.msra.mxu0 0
    %3280 = vmatprep.subr.bf16.mxu0 0
    %3281 = vmatpush2.bf16.msra.mxu0 0
    %3282 = vmatprep.subr.bf16.mxu0 %v3027
    %3283 = vmatpush2.bf16.msra.mxu0 %v3026
    %3284 = vmatprep.mubr.bf16.mxu0 %v3209
    %3285 = vmatmul.mubr.bf16.gmra.mxu0 %v2069
    %v3286 = vpop.f32.mrf.mxu0
    %v3287 = vadd.f32 %v3246, %v3286
    %v3288 = vpop.f32.mrf.mxu0
    %v3289 = vadd.f32 %v3248, %v3288
    %v3290 = vpop.f32.mrf.mxu0
    %v3291 = vpop.f32.mrf.mxu0
    %3292 = vdwg.mxu0
    %3293 = vmatprep.subr.bf16.mxu0 %v2910
    %3294 = vmatpush1.bf16.msra.mxu0 %v2909
    %3295 = vmatprep.subr.bf16.mxu0 %v2903
    %3296 = vmatpush1.bf16.msra.mxu0 %v2902
    %3297 = vmatprep.subr.bf16.mxu0 %v2896
    %3298 = vmatpush1.bf16.msra.mxu0 %v2895
    %3299 = vmatprep.subr.bf16.mxu0 %v2889
    %3300 = vmatpush1.bf16.msra.mxu0 %v2888
    %3301 = vmatprep.subr.bf16.mxu0 %v2882
    %3302 = vmatpush1.bf16.msra.mxu0 %v2881
    %3303 = vmatprep.subr.bf16.mxu0 %v2875
    %3304 = vmatpush1.bf16.msra.mxu0 %v2874
    %3305 = vmatprep.subr.bf16.mxu0 %v2868
    %3306 = vmatpush1.bf16.msra.mxu0 %v2867
    %3307 = vmatprep.subr.bf16.mxu0 %v2861
    %3308 = vmatpush1.bf16.msra.mxu0 %v2860
    %3309 = vmatprep.subr.bf16.mxu0 %v2966
    %3310 = vmatpush2.bf16.msra.mxu0 %v2965
    %3311 = vmatprep.subr.bf16.mxu0 %v2959
    %3312 = vmatpush2.bf16.msra.mxu0 %v2958
    %3313 = vmatprep.subr.bf16.mxu0 %v2952
    %3314 = vmatpush2.bf16.msra.mxu0 %v2951
    %3315 = vmatprep.subr.bf16.mxu0 %v2945
    %3316 = vmatpush2.bf16.msra.mxu0 %v2944
    %3317 = vmatprep.subr.bf16.mxu0 %v2938
    %3318 = vmatpush2.bf16.msra.mxu0 %v2937
    %3319 = vmatprep.subr.bf16.mxu0 %v2931
    %3320 = vmatpush2.bf16.msra.mxu0 %v2930
    %3321 = vmatprep.subr.bf16.mxu0 %v2924
    %3322 = vmatpush2.bf16.msra.mxu0 %v2923
    %3323 = vmatprep.subr.bf16.mxu0 %v2917
    %3324 = vmatpush2.bf16.msra.mxu0 %v2916
    %3325 = vmatprep.mubr.bf16.mxu0 %v2068
    %3326 = vmatmul.mubr.bf16.gmra.mxu0 %v2067
    %v3327 = vpop.f32.mrf.mxu0
    %v3328 = vadd.f32 %v2284, %v3327
    %v3329 = vpop.f32.mrf.mxu0
    %v3330 = vadd.f32 %v2288, %v3329
    %v3331 = vpop.f32.mrf.mxu0
    %v3332 = vpop.f32.mrf.mxu0
    %3333 = vdwg.mxu0
    %3334 = vmatprep.subr.bf16.mxu0 %v3022
    %3335 = vmatpush1.bf16.msra.mxu0 %v3021
    %3336 = vmatprep.subr.bf16.mxu0 %v3015
    %3337 = vmatpush1.bf16.msra.mxu0 %v3014
    %3338 = vmatprep.subr.bf16.mxu0 %v3008
    %3339 = vmatpush1.bf16.msra.mxu0 %v3007
    %3340 = vmatprep.subr.bf16.mxu0 %v3001
    %3341 = vmatpush1.bf16.msra.mxu0 %v3000
    %3342 = vmatprep.subr.bf16.mxu0 %v2994
    %3343 = vmatpush1.bf16.msra.mxu0 %v2993
    %3344 = vmatprep.subr.bf16.mxu0 %v2987
    %3345 = vmatpush1.bf16.msra.mxu0 %v2986
    %3346 = vmatprep.subr.bf16.mxu0 %v2980
    %3347 = vmatpush1.bf16.msra.mxu0 %v2979
    %3348 = vmatprep.subr.bf16.mxu0 %v2973
    %3349 = vmatpush1.bf16.msra.mxu0 %v2972
    %3350 = vmatprep.subr.bf16.mxu0 0
    %3351 = vmatpush2.bf16.msra.mxu0 0
    %3352 = vmatprep.subr.bf16.mxu0 0
    %3353 = vmatpush2.bf16.msra.mxu0 0
    %3354 = vmatprep.subr.bf16.mxu0 0
    %3355 = vmatpush2.bf16.msra.mxu0 0
    %3356 = vmatprep.subr.bf16.mxu0 0
    %3357 = vmatpush2.bf16.msra.mxu0 0
    %3358 = vmatprep.subr.bf16.mxu0 0
    %3359 = vmatpush2.bf16.msra.mxu0 0
    %3360 = vmatprep.subr.bf16.mxu0 0
    %3361 = vmatpush2.bf16.msra.mxu0 0
    %3362 = vmatprep.subr.bf16.mxu0 0
    %3363 = vmatpush2.bf16.msra.mxu0 0
    %3364 = vmatprep.subr.bf16.mxu0 %v3029
    %3365 = vmatpush2.bf16.msra.mxu0 %v3028
    %3366 = vmatprep.mubr.bf16.mxu0 %v3209
    %3367 = vmatmul.mubr.bf16.gmra.mxu0 %v2069
    %v3368 = vpop.f32.mrf.mxu0
    %v3369 = vadd.f32 %v3328, %v3368
    %v3370 = vpop.f32.mrf.mxu0
    %v3371 = vadd.f32 %v3330, %v3370
    %v3372 = vpop.f32.mrf.mxu0
    %v3373 = vpop.f32.mrf.mxu0
    %3374 = vdwg.mxu0
    %3375 = vmatprep.subr.bf16.mxu0 %v2912
    %3376 = vmatpush1.bf16.msra.mxu0 %v2911
    %3377 = vmatprep.subr.bf16.mxu0 %v2905
    %3378 = vmatpush1.bf16.msra.mxu0 %v2904
    %3379 = vmatprep.subr.bf16.mxu0 %v2898
    %3380 = vmatpush1.bf16.msra.mxu0 %v2897
    %3381 = vmatprep.subr.bf16.mxu0 %v2891
    %3382 = vmatpush1.bf16.msra.mxu0 %v2890
    %3383 = vmatprep.subr.bf16.mxu0 %v2884
    %3384 = vmatpush1.bf16.msra.mxu0 %v2883
    %3385 = vmatprep.subr.bf16.mxu0 %v2877
    %3386 = vmatpush1.bf16.msra.mxu0 %v2876
    %3387 = vmatprep.subr.bf16.mxu0 %v2870
    %3388 = vmatpush1.bf16.msra.mxu0 %v2869
    %3389 = vmatprep.subr.bf16.mxu0 %v2863
    %3390 = vmatpush1.bf16.msra.mxu0 %v2862
    %3391 = vmatprep.subr.bf16.mxu0 %v2968
    %3392 = vmatpush2.bf16.msra.mxu0 %v2967
    %3393 = vmatprep.subr.bf16.mxu0 %v2961
    %3394 = vmatpush2.bf16.msra.mxu0 %v2960
    %3395 = vmatprep.subr.bf16.mxu0 %v2954
    %3396 = vmatpush2.bf16.msra.mxu0 %v2953
    %3397 = vmatprep.subr.bf16.mxu0 %v2947
    %3398 = vmatpush2.bf16.msra.mxu0 %v2946
    %3399 = vmatprep.subr.bf16.mxu0 %v2940
    %3400 = vmatpush2.bf16.msra.mxu0 %v2939
    %3401 = vmatprep.subr.bf16.mxu0 %v2933
    %3402 = vmatpush2.bf16.msra.mxu0 %v2932
    %3403 = vmatprep.subr.bf16.mxu0 %v2926
    %3404 = vmatpush2.bf16.msra.mxu0 %v2925
    %3405 = vmatprep.subr.bf16.mxu0 %v2919
    %3406 = vmatpush2.bf16.msra.mxu0 %v2918
    %3407 = vmatprep.mubr.bf16.mxu0 %v2068
    %3408 = vmatmul.mubr.bf16.gmra.mxu0 %v2067
    %v3409 = vpop.f32.mrf.mxu0
    %v3410 = vadd.f32 %v2292, %v3409
    %v3411 = vpop.f32.mrf.mxu0
    %v3412 = vadd.f32 %v2296, %v3411
    %v3413 = vpop.f32.mrf.mxu0
    %v3414 = vpop.f32.mrf.mxu0
    %3415 = vdwg.mxu0
    %3416 = vmatprep.subr.bf16.mxu0 %v3024
    %3417 = vmatpush1.bf16.msra.mxu0 %v3023
    %3418 = vmatprep.subr.bf16.mxu0 %v3017
    %3419 = vmatpush1.bf16.msra.mxu0 %v3016
    %3420 = vmatprep.subr.bf16.mxu0 %v3010
    %3421 = vmatpush1.bf16.msra.mxu0 %v3009
    %3422 = vmatprep.subr.bf16.mxu0 %v3003
    %3423 = vmatpush1.bf16.msra.mxu0 %v3002
    %3424 = vmatprep.subr.bf16.mxu0 %v2996
    %3425 = vmatpush1.bf16.msra.mxu0 %v2995
    %3426 = vmatprep.subr.bf16.mxu0 %v2989
    %3427 = vmatpush1.bf16.msra.mxu0 %v2988
    %3428 = vmatprep.subr.bf16.mxu0 %v2982
    %3429 = vmatpush1.bf16.msra.mxu0 %v2981
    %3430 = vmatprep.subr.bf16.mxu0 %v2975
    %3431 = vmatpush1.bf16.msra.mxu0 %v2974
    %3432 = vmatprep.subr.bf16.mxu0 0
    %3433 = vmatpush2.bf16.msra.mxu0 0
    %3434 = vmatprep.subr.bf16.mxu0 0
    %3435 = vmatpush2.bf16.msra.mxu0 0
    %3436 = vmatprep.subr.bf16.mxu0 0
    %3437 = vmatpush2.bf16.msra.mxu0 0
    %3438 = vmatprep.subr.bf16.mxu0 0
    %3439 = vmatpush2.bf16.msra.mxu0 0
    %3440 = vmatprep.subr.bf16.mxu0 0
    %3441 = vmatpush2.bf16.msra.mxu0 0
    %3442 = vmatprep.subr.bf16.mxu0 0
    %3443 = vmatpush2.bf16.msra.mxu0 0
    %3444 = vmatprep.subr.bf16.mxu0 0
    %3445 = vmatpush2.bf16.msra.mxu0 0
    %3446 = vmatprep.subr.bf16.mxu0 %v3031
    %3447 = vmatpush2.bf16.msra.mxu0 %v3030
    %3448 = vmatprep.mubr.bf16.mxu0 %v3209
    %3449 = vmatmul.mubr.bf16.gmra.mxu0 %v2069
    %v3450 = vpop.f32.mrf.mxu0
    %v3451 = vadd.f32 %v3410, %v3450
    %v3452 = vpop.f32.mrf.mxu0
    %v3453 = vadd.f32 %v3412, %v3452
    %v3454 = vpop.f32.mrf.mxu0
    %v3455 = vpop.f32.mrf.mxu0
    %3456 = vdwg.mxu0
    %3457 = vmatprep.subr.bf16.mxu0 0
    %3458 = vmatpush1.bf16.msra.mxu0 %v2913
    %3459 = vmatprep.subr.bf16.mxu0 0
    %3460 = vmatpush1.bf16.msra.mxu0 %v2906
    %3461 = vmatprep.subr.bf16.mxu0 0
    %3462 = vmatpush1.bf16.msra.mxu0 %v2899
    %3463 = vmatprep.subr.bf16.mxu0 0
    %3464 = vmatpush1.bf16.msra.mxu0 %v2892
    %3465 = vmatprep.subr.bf16.mxu0 0
    %3466 = vmatpush1.bf16.msra.mxu0 %v2885
    %3467 = vmatprep.subr.bf16.mxu0 0
    %3468 = vmatpush1.bf16.msra.mxu0 %v2878
    %3469 = vmatprep.subr.bf16.mxu0 0
    %3470 = vmatpush1.bf16.msra.mxu0 %v2871
    %3471 = vmatprep.subr.bf16.mxu0 0
    %3472 = vmatpush1.bf16.msra.mxu0 %v2864
    %3473 = vmatprep.subr.bf16.mxu0 0
    %3474 = vmatpush2.bf16.msra.mxu0 %v2969
    %3475 = vmatprep.subr.bf16.mxu0 0
    %3476 = vmatpush2.bf16.msra.mxu0 %v2962
    %3477 = vmatprep.subr.bf16.mxu0 0
    %3478 = vmatpush2.bf16.msra.mxu0 %v2955
    %3479 = vmatprep.subr.bf16.mxu0 0
    %3480 = vmatpush2.bf16.msra.mxu0 %v2948
    %3481 = vmatprep.subr.bf16.mxu0 0
    %3482 = vmatpush2.bf16.msra.mxu0 %v2941
    %3483 = vmatprep.subr.bf16.mxu0 0
    %3484 = vmatpush2.bf16.msra.mxu0 %v2934
    %3485 = vmatprep.subr.bf16.mxu0 0
    %3486 = vmatpush2.bf16.msra.mxu0 %v2927
    %3487 = vmatprep.subr.bf16.mxu0 0
    %3488 = vmatpush2.bf16.msra.mxu0 %v2920
    %3489 = vmatprep.mubr.bf16.mxu0 %v2068
    %3490 = vmatmul.mubr.bf16.gmra.mxu0 %v2067
    %v3491 = vpop.f32.mrf.mxu0
    %v3492 = vadd.f32 %v2300, %v3491
    %v3493 = vpop.f32.mrf.mxu0
    %v3494 = vpop.f32.mrf.mxu0
    %v3495 = vpop.f32.mrf.mxu0
    %3496 = vdwg.mxu0
    %3497 = vmatprep.subr.bf16.mxu0 0
    %3498 = vmatpush1.bf16.msra.mxu0 %v3025
    %3499 = vmatprep.subr.bf16.mxu0 0
    %3500 = vmatpush1.bf16.msra.mxu0 %v3018
    %3501 = vmatprep.subr.bf16.mxu0 0
    %3502 = vmatpush1.bf16.msra.mxu0 %v3011
    %3503 = vmatprep.subr.bf16.mxu0 0
    %3504 = vmatpush1.bf16.msra.mxu0 %v3004
    %3505 = vmatprep.subr.bf16.mxu0 0
    %3506 = vmatpush1.bf16.msra.mxu0 %v2997
    %3507 = vmatprep.subr.bf16.mxu0 0
    %3508 = vmatpush1.bf16.msra.mxu0 %v2990
    %3509 = vmatprep.subr.bf16.mxu0 0
    %3510 = vmatpush1.bf16.msra.mxu0 %v2983
    %3511 = vmatprep.subr.bf16.mxu0 0
    %3512 = vmatpush1.bf16.msra.mxu0 %v2976
    %3513 = vmatprep.subr.bf16.mxu0 0
    %3514 = vmatpush2.bf16.msra.mxu0 0
    %3515 = vmatprep.subr.bf16.mxu0 0
    %3516 = vmatpush2.bf16.msra.mxu0 0
    %3517 = vmatprep.subr.bf16.mxu0 0
    %3518 = vmatpush2.bf16.msra.mxu0 0
    %3519 = vmatprep.subr.bf16.mxu0 0
    %3520 = vmatpush2.bf16.msra.mxu0 0
    %3521 = vmatprep.subr.bf16.mxu0 0
    %3522 = vmatpush2.bf16.msra.mxu0 0
    %3523 = vmatprep.subr.bf16.mxu0 0
    %3524 = vmatpush2.bf16.msra.mxu0 0
    %3525 = vmatprep.subr.bf16.mxu0 0
    %3526 = vmatpush2.bf16.msra.mxu0 0
    %3527 = vmatprep.subr.bf16.mxu0 0
    %3528 = vmatpush2.bf16.msra.mxu0 %v3032
    %3529 = vmatprep.mubr.bf16.mxu0 %v3209
    %3530 = vmatmul.mubr.bf16.gmra.mxu0 %v2069
    %v3531 = vpop.f32.mrf.mxu0
    %v3532 = vadd.f32 %v3492, %v3531
    %v3533 = vpop.f32.mrf.mxu0
    %v3534 = vpop.f32.mrf.mxu0
    %v3535 = vpop.f32.mrf.mxu0
    %3536 = vdwg.mxu0
    %v3537 = vxor.u32 %v3287, 2147483648
    %v3538 = vxor.u32 %v3289, 2147483648
    %v3539 = vxor.u32 %v3369, 2147483648
    %v3540 = vxor.u32 %v3371, 2147483648
    %v3541 = vxor.u32 %v3451, 2147483648
    %v3542 = vxor.u32 %v3453, 2147483648
    %v3543 = vxor.u32 %v3532, 2147483648
    %v3544 = vmul.f32 %v3537, 1.442695
    %v3545 = vpow.pop %v3544
    %v3546 = vmul.f32 %v3538, 1.442695
    %v3547 = vpow.pop %v3546
    %v3548 = vmul.f32 %v3539, 1.442695
    %v3549 = vpow.pop %v3548
    %v3550 = vmul.f32 %v3540, 1.442695
    %v3551 = vpow.pop %v3550
    %v3552 = vmul.f32 %v3541, 1.442695
    %v3553 = vpow.pop %v3552
    %v3554 = vmul.f32 %v3542, 1.442695
    %v3555 = vpow.pop %v3554
    %v3556 = vmul.f32 %v3543, 1.442695
    %v3557 = vpow.pop %v3556
    %v3558 = vadd.f32 %v3545, 1.0
    %v3559 = vadd.f32 %v3547, 1.0
    %v3560 = vadd.f32 %v3549, 1.0
    %v3561 = vadd.f32 %v3551, 1.0
    %v3562 = vadd.f32 %v3553, 1.0
    %v3563 = vadd.f32 %v3555, 1.0
    %v3564 = vadd.f32 %v3557, 1.0
    %v3565 = vrcp.pop %v3558
    %v3566 = vmul.f32 1.0, %v3565
    %v3567 = vrcp.pop %v3559
    %v3568 = vmul.f32 1.0, %v3567
    %v3569 = vrcp.pop %v3560
    %v3570 = vmul.f32 1.0, %v3569
    %v3571 = vrcp.pop %v3561
    %v3572 = vmul.f32 1.0, %v3571
    %v3573 = vrcp.pop %v3562
    %v3574 = vmul.f32 1.0, %v3573
    %v3575 = vrcp.pop %v3563
    %v3576 = vmul.f32 1.0, %v3575
    %v3577 = vrcp.pop %v3564
    %v3578 = vmul.f32 1.0, %v3577
    %v3579 = vpack.c.bf16 %v3566, %v3566
    %v3580 = vpack.c.bf16 %v3568, %v3568
    %v3581 = vpack.c.bf16 %v3570, %v3570
    %v3582 = vpack.c.bf16 %v3572, %v3572
    %v3583 = vpack.c.bf16 %v3574, %v3574
    %v3584 = vpack.c.bf16 %v3576, %v3576
    %v3585 = vpack.c.bf16 %v3578, %v3578
    %v3593 = vunpack.c.l.b16 %v3579
    %v3594 = vunpack.c.l.b16 %v3580
    %v3595 = vunpack.c.l.b16 %v3581
    %v3596 = vunpack.c.l.b16 %v3582
    %v3597 = vunpack.c.l.b16 %v3583
    %v3598 = vunpack.c.l.b16 %v3584
    %v3599 = vunpack.c.l.b16 %v3585
    %v3600 = vpack.c.b16 %v3594, %v3593
    %v3601 = vpack.c.b16 %v3596, %v3595
    %v3602 = vpack.c.b16 %v3598, %v3597
    %v3603 = vpack.c.b16 %v3599, %v3599
    %3608 = vst [vmem:[#allocation2] sm:$0xff] %v3600
    %3609 = vst [vmem:[#allocation2 + $0x8] sm:$0xff] %v3601
    %3610 = vst [vmem:[#allocation2 + $0x10] sm:$0xff] %v3602
    %vm3611 = vcmask 125952
    %3612 = vst.msk [vmem:[#allocation2 + $0x18] sm:$0xf] %vm3611, %v3603
    %3613 = vst [vmem:[%s11] sm:$0xff] %v1891
    // Predicated region
    $region42: #{vae_forward.1} parent=1 // pred_check
      _
    $region43: #{vae_forward.1} parent=1 // pred_check_branch
      %3615 = sbr.rel (0) target = $region45
    $region44: #{vae_forward.1} parent=1 // pred_region
      %s3617 = ssub.s32 448, 448
      %3618 = vsyncadd [#allocation3], %s3617
      %s3620 = sshll.u32 [#allocation2], 4
      %s3621 = int_to_ptr.vmem [resolvable:$true] %s3620
      %3623 = dma.vmem_to_hbm [thread:$0]  %s3621, 448, %s10, [#allocation3]
    $region45: #{vae_forward.1} parent=1 // pred_fallthru
      _
    // Predicated region
    $region46: #{vae_forward.1} parent=1 // pred_check
      _
    $region47: #{vae_forward.1} parent=1 // pred_check_branch
      %3625 = sbr.rel (0) target = $region49
    $region48: #{vae_forward.1} parent=1 // pred_region
      _
    $region49: #{vae_forward.1} parent=1 // pred_fallthru
      _
    // Predicated region
    $region50: #{vae_forward.1} parent=1 // pred_check
      _
    $region51: #{vae_forward.1} parent=1 // pred_check_branch
      %3627 = sbr.rel (0) target = $region53
    $region52: #{vae_forward.1} parent=1 // pred_region
      %3628 = dma.done [#allocation3], 448
    $region53: #{vae_forward.1} parent=1 // pred_fallthru
      _
    // Predicated region
    $region54: #{vae_forward.1} parent=1 // pred_check
      _
    $region55: #{vae_forward.1} parent=1 // pred_check_branch
      %3630 = sbr.rel (0) target = $region57
    $region56: #{vae_forward.1} parent=1 // pred_region
      _
    $region57: #{vae_forward.1} parent=1 // pred_fallthru
      _
    %3631 = vsyncpa [#allocation3], 1

</llo_original>
